<compile_context>
chip_gen: v7x
topology: tpu7x:2x2x1
jax: 0.10.0
libtpu: 0.0.40
codegen_flags: <defaults>
</compile_context>

<pallas_src>
import math
import jax
import jax.numpy as jnp
from jax.experimental import pallas as pl
from jax.experimental.pallas import tpu as pltpu

INPUT_DIM = 28
HIDDEN_DIM = 128
OUTPUT_DIM = 10
O_PAD = 128  # lane-dense padded width for the final FC output


def _make_gru_kernel(S, B, H):
    """Builds the kernel for static (seq, batch, hidden) sizes."""

    def _gru_kernel(x_ref, wx_ref, b_ref, wh_ref, wfc_ref, bfc_ref, out_ref):
        # ---- Hoisted input-side gates: one big matmul, off the recurrent path.
        # x_ref: (S*B, D); wx_ref: (D, 3H); b_ref: (1, 3H) where b = bx + bh.
        gate_x = (jnp.dot(x_ref[...], wx_ref[...],
                          preferred_element_type=jnp.float32) + b_ref[...])

        wh = wh_ref[...]                       # (H, 3H), held in vregs/VMEM
        h = jnp.zeros((B, H), jnp.float32)

        # ---- Recurrent loop, fully unrolled (S is small & static).
        # Only h @ Wh remains on the sequential dependency chain.
        for t in range(S):
            gx = gate_x[t * B:(t + 1) * B, :]                 # static slice
            gh = jnp.dot(h, wh, preferred_element_type=jnp.float32)
            i_r, i_i, i_n = gx[:, :H], gx[:, H:2 * H], gx[:, 2 * H:]
            h_r, h_i, h_n = gh[:, :H], gh[:, H:2 * H], gh[:, 2 * H:]
            r = jax.nn.sigmoid(i_r + h_r)
            z = jax.nn.sigmoid(i_i + h_i)
            # NOTE: intentionally nonstandard GRU (matches the PyTorch spec):
            #   newgate = tanh(i_n + (resetgate + h_n))   -- '+', not r * h_n
            #   hy      = n + z * (h - n)                 -- not the (1-z) form
            n = jnp.tanh(i_n + (r + h_n))
            h = n + z * (h - n)

        # ---- Final FC on the last hidden state (padded to 128 lanes).
        out_ref[...] = (jnp.dot(h, wfc_ref[...],
                                preferred_element_type=jnp.float32)
                        + bfc_ref[...])

    return _gru_kernel


def gru_model_forward(x, params):
    """x: (batch, seq, input_dim) float32 -> (batch, output_dim) float32."""
    B, S, D = x.shape
    H = params["wh_t"].shape[0]
    O = params["bfc"].shape[-1]

    # Time-major, flattened to (S*B, D) so the x-side gates are one matmul.
    x_flat = jnp.transpose(x, (1, 0, 2)).reshape(S * B, D)

    # Fuse the two gate biases (the cell always sums them).
    b = params["bx"] + params["bh"]

    # Pad the final FC to a lane-dense 128-wide output; slice back afterwards.
    wfc_p = jnp.zeros((H, O_PAD), jnp.float32).at[:, :O].set(params["wfc_t"])
    bfc_p = jnp.zeros((1, O_PAD), jnp.float32).at[:, :O].set(params["bfc"])

    vmem_spec = lambda: pl.BlockSpec(memory_space=pltpu.MemorySpace.VMEM)

    out_padded = pl.pallas_call(
        _make_gru_kernel(S, B, H),
        out_shape=jax.ShapeDtypeStruct((B, O_PAD), jnp.float32),
        in_specs=[vmem_spec() for _ in range(6)],
        out_specs=vmem_spec(),
    )(x_flat, params["wx_t"], b, params["wh_t"], wfc_p, bfc_p)

    return out_padded[:, :O]


def init_params(key, input_dim=INPUT_DIM, hidden_dim=HIDDEN_DIM,
                output_dim=OUTPUT_DIM):
    """Deterministic init mirroring the PyTorch module's reset_parameters."""
    k = jax.random.split(key, 6)
    std = 1.0 / math.sqrt(hidden_dim)          # GRUCell.reset_parameters
    std_fc = 1.0 / math.sqrt(hidden_dim)       # nn.Linear default for fc
    u = lambda kk, shape, s: jax.random.uniform(kk, shape, jnp.float32, -s, s)
    # Stored already transposed: (in, out).
    return {
        "wx_t": u(k[0], (input_dim, 3 * hidden_dim), std),
        "bx":   u(k[1], (1, 3 * hidden_dim), std),
        "wh_t": u(k[2], (hidden_dim, 3 * hidden_dim), std),
        "bh":   u(k[3], (1, 3 * hidden_dim), std),
        "wfc_t": u(k[4], (hidden_dim, output_dim), std_fc),
        "bfc":  u(k[5], (1, output_dim), std_fc),
    }


def gru_model_reference(x, params):
    """Pure-JAX reference of the exact PyTorch forward (for validation)."""
    B, S, D = x.shape
    H = params["wh_t"].shape[0]
    h = jnp.zeros((B, H), jnp.float32)
    for t in range(S):
        xt = x[:, t, :]
        gx = xt @ params["wx_t"] + params["bx"]
        gh = h @ params["wh_t"] + params["bh"]
        i_r, i_i, i_n = gx[:, :H], gx[:, H:2 * H], gx[:, 2 * H:]
        h_r, h_i, h_n = gh[:, :H], gh[:, H:2 * H], gh[:, 2 * H:]
        r = jax.nn.sigmoid(i_r + h_r)
        z = jax.nn.sigmoid(i_i + h_i)
        n = jnp.tanh(i_n + (r + h_n))
        h = n + z * (h - n)
    return h @ params["wfc_t"] + params["bfc"]


if __name__ == "__main__":
    key = jax.random.PRNGKey(0)
    kx, kp = jax.random.split(key)

    batch, seq = 8, 8
    x = jax.random.normal(kx, (batch, seq, INPUT_DIM), jnp.float32)
    params = init_params(kp)

    out = gru_model_forward(x, params)
    out = jax.block_until_ready(out)

    ref = gru_model_reference(x, params)
    assert out.shape == (batch, OUTPUT_DIM)
    assert jnp.allclose(out, ref, atol=1e-4, rtol=1e-4), "mismatch vs reference"

    print("KERNEL_OK")
</pallas_src>

<mosaic_0001>
module attributes {stable_mosaic.version = 11 : i64} {
  func.func @_gru_kernel(%arg0: memref<64x28xf32, #tpu.memory_space<vmem>>, %arg1: memref<28x384xf32, #tpu.memory_space<vmem>>, %arg2: memref<1x384xf32, #tpu.memory_space<vmem>>, %arg3: memref<128x384xf32, #tpu.memory_space<vmem>>, %arg4: memref<128x128xf32, #tpu.memory_space<vmem>>, %arg5: memref<1x128xf32, #tpu.memory_space<vmem>>, %arg6: memref<8x128xf32, #tpu.memory_space<vmem>>) attributes {dimension_semantics = [], scalar_prefetch = 0 : i64, scratch_operands = 0 : i64, tpu.core_type = #tpu.core_type<tc>} {
    %c0 = arith.constant 0 : index
    %c0_0 = arith.constant 0 : index
    %0 = vector.load %arg0[%c0, %c0_0] : memref<64x28xf32, #tpu.memory_space<vmem>>, vector<64x28xf32>
    %c0_1 = arith.constant 0 : index
    %c0_2 = arith.constant 0 : index
    %1 = vector.load %arg1[%c0_1, %c0_2] : memref<28x384xf32, #tpu.memory_space<vmem>>, vector<28x384xf32>
    %cst = arith.constant dense<0.000000e+00> : vector<64x384xf32>
    %2 = tpu.matmul %0, %1, %cst {dimension_numbers = #tpu.dot_dimension_numbers<[1], [0], [0], [1], [0, 0, 1, 1], [], []>} : vector<64x28xf32>, vector<28x384xf32>, vector<64x384xf32> -> vector<64x384xf32>
    %c0_3 = arith.constant 0 : index
    %c0_4 = arith.constant 0 : index
    %3 = vector.load %arg2[%c0_3, %c0_4] : memref<1x384xf32, #tpu.memory_space<vmem>>, vector<1x384xf32>
    %4 = vector.broadcast %3 : vector<1x384xf32> to vector<64x384xf32>
    %5 = arith.addf %2, %4 : vector<64x384xf32>
    %c0_5 = arith.constant 0 : index
    %c0_6 = arith.constant 0 : index
    %6 = vector.load %arg3[%c0_5, %c0_6] : memref<128x384xf32, #tpu.memory_space<vmem>>, vector<128x384xf32>
    %cst_7 = arith.constant 0.000000e+00 : f32
    %7 = vector.broadcast %cst_7 : f32 to vector<8x128xf32>
    %8 = vector.extract_strided_slice %5 {offsets = [0, 0], sizes = [8, 384], strides = [1, 1]} : vector<64x384xf32> to vector<8x384xf32>
    %cst_8 = arith.constant dense<0.000000e+00> : vector<8x384xf32>
    %9 = tpu.matmul %7, %6, %cst_8 {dimension_numbers = #tpu.dot_dimension_numbers<[1], [0], [0], [1], [0, 0, 1, 1], [], []>} : vector<8x128xf32>, vector<128x384xf32>, vector<8x384xf32> -> vector<8x384xf32>
    %10 = vector.extract_strided_slice %8 {offsets = [0, 0], sizes = [8, 128], strides = [1, 1]} : vector<8x384xf32> to vector<8x128xf32>
    %11 = vector.extract_strided_slice %8 {offsets = [0, 128], sizes = [8, 128], strides = [1, 1]} : vector<8x384xf32> to vector<8x128xf32>
    %12 = vector.extract_strided_slice %8 {offsets = [0, 256], sizes = [8, 128], strides = [1, 1]} : vector<8x384xf32> to vector<8x128xf32>
    %13 = vector.extract_strided_slice %9 {offsets = [0, 0], sizes = [8, 128], strides = [1, 1]} : vector<8x384xf32> to vector<8x128xf32>
    %14 = vector.extract_strided_slice %9 {offsets = [0, 128], sizes = [8, 128], strides = [1, 1]} : vector<8x384xf32> to vector<8x128xf32>
    %15 = vector.extract_strided_slice %9 {offsets = [0, 256], sizes = [8, 128], strides = [1, 1]} : vector<8x384xf32> to vector<8x128xf32>
    %16 = arith.addf %10, %13 : vector<8x128xf32>
    %17 = arith.negf %16 : vector<8x128xf32>
    %18 = math.exp %17 : vector<8x128xf32>
    %cst_9 = arith.constant 1.000000e+00 : f32
    %19 = vector.broadcast %cst_9 : f32 to vector<8x128xf32>
    %20 = arith.addf %19, %18 : vector<8x128xf32>
    %21 = arith.divf %19, %20 : vector<8x128xf32>
    %22 = arith.addf %11, %14 : vector<8x128xf32>
    %23 = arith.negf %22 : vector<8x128xf32>
    %24 = math.exp %23 : vector<8x128xf32>
    %cst_10 = arith.constant 1.000000e+00 : f32
    %25 = vector.broadcast %cst_10 : f32 to vector<8x128xf32>
    %26 = arith.addf %25, %24 : vector<8x128xf32>
    %27 = arith.divf %25, %26 : vector<8x128xf32>
    %28 = arith.addf %21, %15 : vector<8x128xf32>
    %29 = arith.addf %12, %28 : vector<8x128xf32>
    %30 = math.tanh %29 : vector<8x128xf32>
    %31 = arith.subf %7, %30 : vector<8x128xf32>
    %32 = arith.mulf %27, %31 : vector<8x128xf32>
    %33 = arith.addf %30, %32 : vector<8x128xf32>
    %34 = vector.extract_strided_slice %5 {offsets = [8, 0], sizes = [8, 384], strides = [1, 1]} : vector<64x384xf32> to vector<8x384xf32>
    %cst_11 = arith.constant dense<0.000000e+00> : vector<8x384xf32>
    %35 = tpu.matmul %33, %6, %cst_11 {dimension_numbers = #tpu.dot_dimension_numbers<[1], [0], [0], [1], [0, 0, 1, 1], [], []>} : vector<8x128xf32>, vector<128x384xf32>, vector<8x384xf32> -> vector<8x384xf32>
    %36 = vector.extract_strided_slice %34 {offsets = [0, 0], sizes = [8, 128], strides = [1, 1]} : vector<8x384xf32> to vector<8x128xf32>
    %37 = vector.extract_strided_slice %34 {offsets = [0, 128], sizes = [8, 128], strides = [1, 1]} : vector<8x384xf32> to vector<8x128xf32>
    %38 = vector.extract_strided_slice %34 {offsets = [0, 256], sizes = [8, 128], strides = [1, 1]} : vector<8x384xf32> to vector<8x128xf32>
    %39 = vector.extract_strided_slice %35 {offsets = [0, 0], sizes = [8, 128], strides = [1, 1]} : vector<8x384xf32> to vector<8x128xf32>
    %40 = vector.extract_strided_slice %35 {offsets = [0, 128], sizes = [8, 128], strides = [1, 1]} : vector<8x384xf32> to vector<8x128xf32>
    %41 = vector.extract_strided_slice %35 {offsets = [0, 256], sizes = [8, 128], strides = [1, 1]} : vector<8x384xf32> to vector<8x128xf32>
    %42 = arith.addf %36, %39 : vector<8x128xf32>
    %43 = arith.negf %42 : vector<8x128xf32>
    %44 = math.exp %43 : vector<8x128xf32>
    %cst_12 = arith.constant 1.000000e+00 : f32
    %45 = vector.broadcast %cst_12 : f32 to vector<8x128xf32>
    %46 = arith.addf %45, %44 : vector<8x128xf32>
    %47 = arith.divf %45, %46 : vector<8x128xf32>
    %48 = arith.addf %37, %40 : vector<8x128xf32>
    %49 = arith.negf %48 : vector<8x128xf32>
    %50 = math.exp %49 : vector<8x128xf32>
    %cst_13 = arith.constant 1.000000e+00 : f32
    %51 = vector.broadcast %cst_13 : f32 to vector<8x128xf32>
    %52 = arith.addf %51, %50 : vector<8x128xf32>
    %53 = arith.divf %51, %52 : vector<8x128xf32>
    %54 = arith.addf %47, %41 : vector<8x128xf32>
    %55 = arith.addf %38, %54 : vector<8x128xf32>
    %56 = math.tanh %55 : vector<8x128xf32>
    %57 = arith.subf %33, %56 : vector<8x128xf32>
    %58 = arith.mulf %53, %57 : vector<8x128xf32>
    %59 = arith.addf %56, %58 : vector<8x128xf32>
    %60 = vector.extract_strided_slice %5 {offsets = [16, 0], sizes = [8, 384], strides = [1, 1]} : vector<64x384xf32> to vector<8x384xf32>
    %cst_14 = arith.constant dense<0.000000e+00> : vector<8x384xf32>
    %61 = tpu.matmul %59, %6, %cst_14 {dimension_numbers = #tpu.dot_dimension_numbers<[1], [0], [0], [1], [0, 0, 1, 1], [], []>} : vector<8x128xf32>, vector<128x384xf32>, vector<8x384xf32> -> vector<8x384xf32>
    %62 = vector.extract_strided_slice %60 {offsets = [0, 0], sizes = [8, 128], strides = [1, 1]} : vector<8x384xf32> to vector<8x128xf32>
    %63 = vector.extract_strided_slice %60 {offsets = [0, 128], sizes = [8, 128], strides = [1, 1]} : vector<8x384xf32> to vector<8x128xf32>
    %64 = vector.extract_strided_slice %60 {offsets = [0, 256], sizes = [8, 128], strides = [1, 1]} : vector<8x384xf32> to vector<8x128xf32>
    %65 = vector.extract_strided_slice %61 {offsets = [0, 0], sizes = [8, 128], strides = [1, 1]} : vector<8x384xf32> to vector<8x128xf32>
    %66 = vector.extract_strided_slice %61 {offsets = [0, 128], sizes = [8, 128], strides = [1, 1]} : vector<8x384xf32> to vector<8x128xf32>
    %67 = vector.extract_strided_slice %61 {offsets = [0, 256], sizes = [8, 128], strides = [1, 1]} : vector<8x384xf32> to vector<8x128xf32>
    %68 = arith.addf %62, %65 : vector<8x128xf32>
    %69 = arith.negf %68 : vector<8x128xf32>
    %70 = math.exp %69 : vector<8x128xf32>
    %cst_15 = arith.constant 1.000000e+00 : f32
    %71 = vector.broadcast %cst_15 : f32 to vector<8x128xf32>
    %72 = arith.addf %71, %70 : vector<8x128xf32>
    %73 = arith.divf %71, %72 : vector<8x128xf32>
    %74 = arith.addf %63, %66 : vector<8x128xf32>
    %75 = arith.negf %74 : vector<8x128xf32>
    %76 = math.exp %75 : vector<8x128xf32>
    %cst_16 = arith.constant 1.000000e+00 : f32
    %77 = vector.broadcast %cst_16 : f32 to vector<8x128xf32>
    %78 = arith.addf %77, %76 : vector<8x128xf32>
    %79 = arith.divf %77, %78 : vector<8x128xf32>
    %80 = arith.addf %73, %67 : vector<8x128xf32>
    %81 = arith.addf %64, %80 : vector<8x128xf32>
    %82 = math.tanh %81 : vector<8x128xf32>
    %83 = arith.subf %59, %82 : vector<8x128xf32>
    %84 = arith.mulf %79, %83 : vector<8x128xf32>
    %85 = arith.addf %82, %84 : vector<8x128xf32>
    %86 = vector.extract_strided_slice %5 {offsets = [24, 0], sizes = [8, 384], strides = [1, 1]} : vector<64x384xf32> to vector<8x384xf32>
    %cst_17 = arith.constant dense<0.000000e+00> : vector<8x384xf32>
    %87 = tpu.matmul %85, %6, %cst_17 {dimension_numbers = #tpu.dot_dimension_numbers<[1], [0], [0], [1], [0, 0, 1, 1], [], []>} : vector<8x128xf32>, vector<128x384xf32>, vector<8x384xf32> -> vector<8x384xf32>
    %88 = vector.extract_strided_slice %86 {offsets = [0, 0], sizes = [8, 128], strides = [1, 1]} : vector<8x384xf32> to vector<8x128xf32>
    %89 = vector.extract_strided_slice %86 {offsets = [0, 128], sizes = [8, 128], strides = [1, 1]} : vector<8x384xf32> to vector<8x128xf32>
    %90 = vector.extract_strided_slice %86 {offsets = [0, 256], sizes = [8, 128], strides = [1, 1]} : vector<8x384xf32> to vector<8x128xf32>
    %91 = vector.extract_strided_slice %87 {offsets = [0, 0], sizes = [8, 128], strides = [1, 1]} : vector<8x384xf32> to vector<8x128xf32>
    %92 = vector.extract_strided_slice %87 {offsets = [0, 128], sizes = [8, 128], strides = [1, 1]} : vector<8x384xf32> to vector<8x128xf32>
    %93 = vector.extract_strided_slice %87 {offsets = [0, 256], sizes = [8, 128], strides = [1, 1]} : vector<8x384xf32> to vector<8x128xf32>
    %94 = arith.addf %88, %91 : vector<8x128xf32>
    %95 = arith.negf %94 : vector<8x128xf32>
    %96 = math.exp %95 : vector<8x128xf32>
    %cst_18 = arith.constant 1.000000e+00 : f32
    %97 = vector.broadcast %cst_18 : f32 to vector<8x128xf32>
    %98 = arith.addf %97, %96 : vector<8x128xf32>
    %99 = arith.divf %97, %98 : vector<8x128xf32>
    %100 = arith.addf %89, %92 : vector<8x128xf32>
    %101 = arith.negf %100 : vector<8x128xf32>
    %102 = math.exp %101 : vector<8x128xf32>
    %cst_19 = arith.constant 1.000000e+00 : f32
    %103 = vector.broadcast %cst_19 : f32 to vector<8x128xf32>
    %104 = arith.addf %103, %102 : vector<8x128xf32>
    %105 = arith.divf %103, %104 : vector<8x128xf32>
    %106 = arith.addf %99, %93 : vector<8x128xf32>
    %107 = arith.addf %90, %106 : vector<8x128xf32>
    %108 = math.tanh %107 : vector<8x128xf32>
    %109 = arith.subf %85, %108 : vector<8x128xf32>
    %110 = arith.mulf %105, %109 : vector<8x128xf32>
    %111 = arith.addf %108, %110 : vector<8x128xf32>
    %112 = vector.extract_strided_slice %5 {offsets = [32, 0], sizes = [8, 384], strides = [1, 1]} : vector<64x384xf32> to vector<8x384xf32>
    %cst_20 = arith.constant dense<0.000000e+00> : vector<8x384xf32>
    %113 = tpu.matmul %111, %6, %cst_20 {dimension_numbers = #tpu.dot_dimension_numbers<[1], [0], [0], [1], [0, 0, 1, 1], [], []>} : vector<8x128xf32>, vector<128x384xf32>, vector<8x384xf32> -> vector<8x384xf32>
    %114 = vector.extract_strided_slice %112 {offsets = [0, 0], sizes = [8, 128], strides = [1, 1]} : vector<8x384xf32> to vector<8x128xf32>
    %115 = vector.extract_strided_slice %112 {offsets = [0, 128], sizes = [8, 128], strides = [1, 1]} : vector<8x384xf32> to vector<8x128xf32>
    %116 = vector.extract_strided_slice %112 {offsets = [0, 256], sizes = [8, 128], strides = [1, 1]} : vector<8x384xf32> to vector<8x128xf32>
    %117 = vector.extract_strided_slice %113 {offsets = [0, 0], sizes = [8, 128], strides = [1, 1]} : vector<8x384xf32> to vector<8x128xf32>
    %118 = vector.extract_strided_slice %113 {offsets = [0, 128], sizes = [8, 128], strides = [1, 1]} : vector<8x384xf32> to vector<8x128xf32>
    %119 = vector.extract_strided_slice %113 {offsets = [0, 256], sizes = [8, 128], strides = [1, 1]} : vector<8x384xf32> to vector<8x128xf32>
    %120 = arith.addf %114, %117 : vector<8x128xf32>
    %121 = arith.negf %120 : vector<8x128xf32>
    %122 = math.exp %121 : vector<8x128xf32>
    %cst_21 = arith.constant 1.000000e+00 : f32
    %123 = vector.broadcast %cst_21 : f32 to vector<8x128xf32>
    %124 = arith.addf %123, %122 : vector<8x128xf32>
    %125 = arith.divf %123, %124 : vector<8x128xf32>
    %126 = arith.addf %115, %118 : vector<8x128xf32>
    %127 = arith.negf %126 : vector<8x128xf32>
    %128 = math.exp %127 : vector<8x128xf32>
    %cst_22 = arith.constant 1.000000e+00 : f32
    %129 = vector.broadcast %cst_22 : f32 to vector<8x128xf32>
    %130 = arith.addf %129, %128 : vector<8x128xf32>
    %131 = arith.divf %129, %130 : vector<8x128xf32>
    %132 = arith.addf %125, %119 : vector<8x128xf32>
    %133 = arith.addf %116, %132 : vector<8x128xf32>
    %134 = math.tanh %133 : vector<8x128xf32>
    %135 = arith.subf %111, %134 : vector<8x128xf32>
    %136 = arith.mulf %131, %135 : vector<8x128xf32>
    %137 = arith.addf %134, %136 : vector<8x128xf32>
    %138 = vector.extract_strided_slice %5 {offsets = [40, 0], sizes = [8, 384], strides = [1, 1]} : vector<64x384xf32> to vector<8x384xf32>
    %cst_23 = arith.constant dense<0.000000e+00> : vector<8x384xf32>
    %139 = tpu.matmul %137, %6, %cst_23 {dimension_numbers = #tpu.dot_dimension_numbers<[1], [0], [0], [1], [0, 0, 1, 1], [], []>} : vector<8x128xf32>, vector<128x384xf32>, vector<8x384xf32> -> vector<8x384xf32>
    %140 = vector.extract_strided_slice %138 {offsets = [0, 0], sizes = [8, 128], strides = [1, 1]} : vector<8x384xf32> to vector<8x128xf32>
    %141 = vector.extract_strided_slice %138 {offsets = [0, 128], sizes = [8, 128], strides = [1, 1]} : vector<8x384xf32> to vector<8x128xf32>
    %142 = vector.extract_strided_slice %138 {offsets = [0, 256], sizes = [8, 128], strides = [1, 1]} : vector<8x384xf32> to vector<8x128xf32>
    %143 = vector.extract_strided_slice %139 {offsets = [0, 0], sizes = [8, 128], strides = [1, 1]} : vector<8x384xf32> to vector<8x128xf32>
    %144 = vector.extract_strided_slice %139 {offsets = [0, 128], sizes = [8, 128], strides = [1, 1]} : vector<8x384xf32> to vector<8x128xf32>
    %145 = vector.extract_strided_slice %139 {offsets = [0, 256], sizes = [8, 128], strides = [1, 1]} : vector<8x384xf32> to vector<8x128xf32>
    %146 = arith.addf %140, %143 : vector<8x128xf32>
    %147 = arith.negf %146 : vector<8x128xf32>
    %148 = math.exp %147 : vector<8x128xf32>
    %cst_24 = arith.constant 1.000000e+00 : f32
    %149 = vector.broadcast %cst_24 : f32 to vector<8x128xf32>
    %150 = arith.addf %149, %148 : vector<8x128xf32>
    %151 = arith.divf %149, %150 : vector<8x128xf32>
    %152 = arith.addf %141, %144 : vector<8x128xf32>
    %153 = arith.negf %152 : vector<8x128xf32>
    %154 = math.exp %153 : vector<8x128xf32>
    %cst_25 = arith.constant 1.000000e+00 : f32
    %155 = vector.broadcast %cst_25 : f32 to vector<8x128xf32>
    %156 = arith.addf %155, %154 : vector<8x128xf32>
    %157 = arith.divf %155, %156 : vector<8x128xf32>
    %158 = arith.addf %151, %145 : vector<8x128xf32>
    %159 = arith.addf %142, %158 : vector<8x128xf32>
    %160 = math.tanh %159 : vector<8x128xf32>
    %161 = arith.subf %137, %160 : vector<8x128xf32>
    %162 = arith.mulf %157, %161 : vector<8x128xf32>
    %163 = arith.addf %160, %162 : vector<8x128xf32>
    %164 = vector.extract_strided_slice %5 {offsets = [48, 0], sizes = [8, 384], strides = [1, 1]} : vector<64x384xf32> to vector<8x384xf32>
    %cst_26 = arith.constant dense<0.000000e+00> : vector<8x384xf32>
    %165 = tpu.matmul %163, %6, %cst_26 {dimension_numbers = #tpu.dot_dimension_numbers<[1], [0], [0], [1], [0, 0, 1, 1], [], []>} : vector<8x128xf32>, vector<128x384xf32>, vector<8x384xf32> -> vector<8x384xf32>
    %166 = vector.extract_strided_slice %164 {offsets = [0, 0], sizes = [8, 128], strides = [1, 1]} : vector<8x384xf32> to vector<8x128xf32>
    %167 = vector.extract_strided_slice %164 {offsets = [0, 128], sizes = [8, 128], strides = [1, 1]} : vector<8x384xf32> to vector<8x128xf32>
    %168 = vector.extract_strided_slice %164 {offsets = [0, 256], sizes = [8, 128], strides = [1, 1]} : vector<8x384xf32> to vector<8x128xf32>
    %169 = vector.extract_strided_slice %165 {offsets = [0, 0], sizes = [8, 128], strides = [1, 1]} : vector<8x384xf32> to vector<8x128xf32>
    %170 = vector.extract_strided_slice %165 {offsets = [0, 128], sizes = [8, 128], strides = [1, 1]} : vector<8x384xf32> to vector<8x128xf32>
    %171 = vector.extract_strided_slice %165 {offsets = [0, 256], sizes = [8, 128], strides = [1, 1]} : vector<8x384xf32> to vector<8x128xf32>
    %172 = arith.addf %166, %169 : vector<8x128xf32>
    %173 = arith.negf %172 : vector<8x128xf32>
    %174 = math.exp %173 : vector<8x128xf32>
    %cst_27 = arith.constant 1.000000e+00 : f32
    %175 = vector.broadcast %cst_27 : f32 to vector<8x128xf32>
    %176 = arith.addf %175, %174 : vector<8x128xf32>
    %177 = arith.divf %175, %176 : vector<8x128xf32>
    %178 = arith.addf %167, %170 : vector<8x128xf32>
    %179 = arith.negf %178 : vector<8x128xf32>
    %180 = math.exp %179 : vector<8x128xf32>
    %cst_28 = arith.constant 1.000000e+00 : f32
    %181 = vector.broadcast %cst_28 : f32 to vector<8x128xf32>
    %182 = arith.addf %181, %180 : vector<8x128xf32>
    %183 = arith.divf %181, %182 : vector<8x128xf32>
    %184 = arith.addf %177, %171 : vector<8x128xf32>
    %185 = arith.addf %168, %184 : vector<8x128xf32>
    %186 = math.tanh %185 : vector<8x128xf32>
    %187 = arith.subf %163, %186 : vector<8x128xf32>
    %188 = arith.mulf %183, %187 : vector<8x128xf32>
    %189 = arith.addf %186, %188 : vector<8x128xf32>
    %190 = vector.extract_strided_slice %5 {offsets = [56, 0], sizes = [8, 384], strides = [1, 1]} : vector<64x384xf32> to vector<8x384xf32>
    %cst_29 = arith.constant dense<0.000000e+00> : vector<8x384xf32>
    %191 = tpu.matmul %189, %6, %cst_29 {dimension_numbers = #tpu.dot_dimension_numbers<[1], [0], [0], [1], [0, 0, 1, 1], [], []>} : vector<8x128xf32>, vector<128x384xf32>, vector<8x384xf32> -> vector<8x384xf32>
    %192 = vector.extract_strided_slice %190 {offsets = [0, 0], sizes = [8, 128], strides = [1, 1]} : vector<8x384xf32> to vector<8x128xf32>
    %193 = vector.extract_strided_slice %190 {offsets = [0, 128], sizes = [8, 128], strides = [1, 1]} : vector<8x384xf32> to vector<8x128xf32>
    %194 = vector.extract_strided_slice %190 {offsets = [0, 256], sizes = [8, 128], strides = [1, 1]} : vector<8x384xf32> to vector<8x128xf32>
    %195 = vector.extract_strided_slice %191 {offsets = [0, 0], sizes = [8, 128], strides = [1, 1]} : vector<8x384xf32> to vector<8x128xf32>
    %196 = vector.extract_strided_slice %191 {offsets = [0, 128], sizes = [8, 128], strides = [1, 1]} : vector<8x384xf32> to vector<8x128xf32>
    %197 = vector.extract_strided_slice %191 {offsets = [0, 256], sizes = [8, 128], strides = [1, 1]} : vector<8x384xf32> to vector<8x128xf32>
    %198 = arith.addf %192, %195 : vector<8x128xf32>
    %199 = arith.negf %198 : vector<8x128xf32>
    %200 = math.exp %199 : vector<8x128xf32>
    %cst_30 = arith.constant 1.000000e+00 : f32
    %201 = vector.broadcast %cst_30 : f32 to vector<8x128xf32>
    %202 = arith.addf %201, %200 : vector<8x128xf32>
    %203 = arith.divf %201, %202 : vector<8x128xf32>
    %204 = arith.addf %193, %196 : vector<8x128xf32>
    %205 = arith.negf %204 : vector<8x128xf32>
    %206 = math.exp %205 : vector<8x128xf32>
    %cst_31 = arith.constant 1.000000e+00 : f32
    %207 = vector.broadcast %cst_31 : f32 to vector<8x128xf32>
    %208 = arith.addf %207, %206 : vector<8x128xf32>
    %209 = arith.divf %207, %208 : vector<8x128xf32>
    %210 = arith.addf %203, %197 : vector<8x128xf32>
    %211 = arith.addf %194, %210 : vector<8x128xf32>
    %212 = math.tanh %211 : vector<8x128xf32>
    %213 = arith.subf %189, %212 : vector<8x128xf32>
    %214 = arith.mulf %209, %213 : vector<8x128xf32>
    %215 = arith.addf %212, %214 : vector<8x128xf32>
    %c0_32 = arith.constant 0 : index
    %c0_33 = arith.constant 0 : index
    %216 = vector.load %arg4[%c0_32, %c0_33] : memref<128x128xf32, #tpu.memory_space<vmem>>, vector<128x128xf32>
    %cst_34 = arith.constant dense<0.000000e+00> : vector<8x128xf32>
    %217 = tpu.matmul %215, %216, %cst_34 {dimension_numbers = #tpu.dot_dimension_numbers<[1], [0], [0], [1], [0, 0, 1, 1], [], []>} : vector<8x128xf32>, vector<128x128xf32>, vector<8x128xf32> -> vector<8x128xf32>
    %c0_35 = arith.constant 0 : index
    %c0_36 = arith.constant 0 : index
    %218 = vector.load %arg5[%c0_35, %c0_36] : memref<1x128xf32, #tpu.memory_space<vmem>>, vector<1x128xf32>
    %219 = vector.broadcast %218 : vector<1x128xf32> to vector<8x128xf32>
    %220 = arith.addf %217, %219 : vector<8x128xf32>
    %c0_37 = arith.constant 0 : index
    %c0_38 = arith.constant 0 : index
    %221 = vector.load %arg6[%c0_37, %c0_38] : memref<8x128xf32, #tpu.memory_space<vmem>>, vector<8x128xf32>
    tpu.vector_store %arg6[%c0_37, %c0_38], %220 {strides = array<i32>} : memref<8x128xf32, #tpu.memory_space<vmem>>, vector<8x128xf32>,
    return
  }
}

</mosaic_0001>

<llo_original>
// kernel: tpu_custom_call.1
$region0: #{tpu_custom_call.1}
  #allocation0 [shape = 'u32[]', space=smem, size = 0x4, offset = 0x4, fixed_abs, tag = 'smem constant byte address 0x4 - core index']
  #allocation1 [shape = 'u32[144,128]{1,0:T(1,128)}', space=vmem, size = 0x12000, scoped, tag = 'internal scratch']
  %s0 = inlined_call_operand.vmem [shape: f32[64,28], index: 0, kind: input, shape index: {}]
  %s1 = inlined_call_operand.vmem [shape: f32[28,384], index: 1, kind: input, shape index: {}]
  %s2 = inlined_call_operand.vmem [shape: f32[1,384], index: 2, kind: input, shape index: {}]
  %s3 = inlined_call_operand.hbm [shape: f32[128,384], index: 3, kind: input, shape index: {}]
  %s4 = inlined_call_operand.hbm [shape: f32[128,128], index: 4, kind: input, shape index: {}]
  %s5 = inlined_call_operand.vmem [shape: f32[1,128], index: 5, kind: input, shape index: {}]
  %s6 = inlined_call_operand.hbm [shape: f32[8,128], index: 6, kind: output, shape index: {}]
  %s7 = sld [smem:[#allocation0]]
  $region42: #{tpu_custom_call.1} parent=0
    _
  %s9 = ssub.s32 1, %s7
  %s10 = scalar_select 0, %s9, %s7
  $region1: #{tpu_custom_call.1} parent=0
    #allocation2 [shape = 'u8[196608]{0}', space=vmem, size = 0x30000, scoped, tag = 'input window, operand 3, single buffered']
    #allocation3 [shape = 's32[1]{0}', space=sflag, size = 0x4, scoped, tag = 'scoped memory for tpu_custom_call.1']
    #allocation4 [shape = 's32[1]{0}', space=sflag, size = 0x4, scoped, tag = 'scoped memory for tpu_custom_call.1']
    #allocation5 [shape = 'u8[65536]{0}', space=vmem, size = 0x10000, scoped, tag = 'input window, operand 4, single buffered']
    #allocation6 [shape = 's32[1]{0}', space=sflag, size = 0x4, scoped, tag = 'scoped memory for tpu_custom_call.1']
    #allocation7 [shape = 'u8[4096]{0}', space=vmem, size = 0x1000, scoped, tag = 'output window, operand 0, single buffered']
    %11 = vsyncpa [#allocation3], 0
    %12 = vsyncpa [#allocation6], 0
    %13 = vsyncpa [#allocation4], 0
    // Predicated region
    $region2: #{tpu_custom_call.1} parent=1 // pred_check
      _
    $region3: #{tpu_custom_call.1} parent=1 // pred_check_branch
      %15 = sbr.rel (0) target = $region5
    $region4: #{tpu_custom_call.1} parent=1 // pred_region
      _
    $region5: #{tpu_custom_call.1} parent=1 // pred_fallthru
      _
    // Predicated region
    $region6: #{tpu_custom_call.1} parent=1 // pred_check
      _
    $region7: #{tpu_custom_call.1} parent=1 // pred_check_branch
      %17 = sbr.rel (0) target = $region9
    $region8: #{tpu_custom_call.1} parent=1 // pred_region
      _
    $region9: #{tpu_custom_call.1} parent=1 // pred_fallthru
      _
    // Predicated region
    $region10: #{tpu_custom_call.1} parent=1 // pred_check
      _
    $region11: #{tpu_custom_call.1} parent=1 // pred_check_branch
      %19 = sbr.rel (0) target = $region13
    $region12: #{tpu_custom_call.1} parent=1 // pred_region
      _
    $region13: #{tpu_custom_call.1} parent=1 // pred_fallthru
      _
    // Predicated region
    $region14: #{tpu_custom_call.1} parent=1 // pred_check
      _
    $region15: #{tpu_custom_call.1} parent=1 // pred_check_branch
      %21 = sbr.rel (0) target = $region17
    $region16: #{tpu_custom_call.1} parent=1 // pred_region
      %s23 = ssub.s32 6144, 6144
      %24 = vsyncadd [#allocation3], %s23
      %s25 = sshll.u32 [#allocation2], 4
      %s26 = int_to_ptr.vmem [resolvable:$true] %s25
      %31 = dma.hbm_to_vmem [thread:$0]  %s3, 6144, %s26, [#allocation3], 384, 384, 24
    $region17: #{tpu_custom_call.1} parent=1 // pred_fallthru
      _
    // Predicated region
    $region18: #{tpu_custom_call.1} parent=1 // pred_check
      _
    $region19: #{tpu_custom_call.1} parent=1 // pred_check_branch
      %33 = sbr.rel (0) target = $region21
    $region20: #{tpu_custom_call.1} parent=1 // pred_region
      %s35 = ssub.s32 2048, 2048
      %36 = vsyncadd [#allocation6], %s35
      %s37 = sshll.u32 [#allocation5], 4
      %s38 = int_to_ptr.vmem [resolvable:$true] %s37
      %43 = dma.hbm_to_vmem [thread:$0]  %s4, 2048, %s38, [#allocation6], 128, 128, 8
    $region21: #{tpu_custom_call.1} parent=1 // pred_fallthru
      _
    // Predicated region
    $region22: #{tpu_custom_call.1} parent=1 // pred_check
      _
    $region23: #{tpu_custom_call.1} parent=1 // pred_check_branch
      %45 = sbr.rel (0) target = $region25
    $region24: #{tpu_custom_call.1} parent=1 // pred_region
      _
    $region25: #{tpu_custom_call.1} parent=1 // pred_fallthru
      _
    // Predicated region
    $region26: #{tpu_custom_call.1} parent=1 // pred_check
      _
    $region27: #{tpu_custom_call.1} parent=1 // pred_check_branch
      %47 = sbr.rel (0) target = $region29
    $region28: #{tpu_custom_call.1} parent=1 // pred_region
      %48 = dma.done [#allocation3], 6144
    $region29: #{tpu_custom_call.1} parent=1 // pred_fallthru
      _
    // Predicated region
    $region30: #{tpu_custom_call.1} parent=1 // pred_check
      _
    $region31: #{tpu_custom_call.1} parent=1 // pred_check_branch
      %50 = sbr.rel (0) target = $region33
    $region32: #{tpu_custom_call.1} parent=1 // pred_region
      %51 = dma.done [#allocation6], 2048
    $region33: #{tpu_custom_call.1} parent=1 // pred_fallthru
      _
    %v52 = vld [vmem:[%s0] sm:$0xff]
    %v53 = vld [vmem:[%s0 + $0x8] sm:$0xff]
    %v54 = vld [vmem:[%s0 + $0x10] sm:$0xff]
    %v55 = vld [vmem:[%s0 + $0x18] sm:$0xff]
    %v56 = vld [vmem:[%s0 + $0x20] sm:$0xff]
    %v57 = vld [vmem:[%s0 + $0x28] sm:$0xff]
    %v58 = vld [vmem:[%s0 + $0x30] sm:$0xff]
    %v59 = vld [vmem:[%s0 + $0x38] sm:$0xff]
    %v60 = vld [vmem:[%s1] sm:$0xff]
    %v61 = vld [vmem:[%s1 + $0x8] sm:$0xff]
    %v62 = vld [vmem:[%s1 + $0x10] sm:$0xff]
    %v63 = vld [vmem:[%s1 + $0x18] sm:$0xff]
    %v64 = vld [vmem:[%s1 + $0x20] sm:$0xff]
    %v65 = vld [vmem:[%s1 + $0x28] sm:$0xff]
    %v66 = vld [vmem:[%s1 + $0x30] sm:$0xff]
    %v67 = vld [vmem:[%s1 + $0x38] sm:$0xff]
    %v68 = vld [vmem:[%s1 + $0x40] sm:$0xff]
    %v69 = vld [vmem:[%s1 + $0x48] sm:$0xf]
    %v70 = vld [vmem:[%s1 + $0x50] sm:$0xf]
    %v71 = vld [vmem:[%s1 + $0x58] sm:$0xf]
    %v72 = vld [vmem:[%s2] sm:$0x7]
    %v74 = vlaneseq
    %v75 = vshrl.u32 %v74, 7
    %v76 = vsub.s32 0, %v75
    %v77 = vrot.slane %v72, %v76
    %v78 = vlaneseq
    %v79 = vshrl.u32 %v78, 7
    %v80 = vsub.s32 1, %v79
    %v81 = vrot.slane %v72, %v80
    %v82 = vlaneseq
    %v83 = vshrl.u32 %v82, 7
    %v84 = vsub.s32 2, %v83
    %v85 = vrot.slane %v72, %v84
    %vm89 = vcmask 228352
    %v91 = vsel %vm89, %v52, 0
    %v94 = vsel %vm89, %v53, 0
    %v97 = vsel %vm89, %v54, 0
    %v100 = vsel %vm89, %v55, 0
    %v103 = vsel %vm89, %v56, 0
    %v106 = vsel %vm89, %v57, 0
    %v109 = vsel %vm89, %v58, 0
    %v112 = vsel %vm89, %v59, 0
    %vm114 = vcmask 1043456
    %v116 = vsel %vm114, %v69, 0
    %v119 = vsel %vm114, %v70, 0
    %v122 = vsel %vm114, %v71, 0
    %124 = vmatprep.subr.mxu0 %v61
    %125 = vmatpush1.msra.mxu0 %v60
    %126 = vmatprep.subr.mxu0 %v64
    %127 = vmatpush1.msra.mxu0 %v63
    %128 = vmatprep.subr.mxu0 %v67
    %129 = vmatpush1.msra.mxu0 %v66
    %130 = vmatprep.subr.mxu0 %v119
    %131 = vmatpush1.msra.mxu0 %v116
    %132 = vmatprep.subr.mxu0 0.0
    %133 = vmatpush1.msra.mxu0 0.0
    %134 = vmatprep.subr.mxu0 0.0
    %135 = vmatpush1.msra.mxu0 0.0
    %136 = vmatprep.subr.mxu0 0.0
    %137 = vmatpush1.msra.mxu0 0.0
    %138 = vmatprep.subr.mxu0 0.0
    %139 = vmatpush1.msra.mxu0 0.0
    %140 = vmatprep.subr.mxu0 0.0
    %141 = vmatpush1.msra.mxu0 0.0
    %142 = vmatprep.subr.mxu0 0.0
    %143 = vmatpush1.msra.mxu0 0.0
    %144 = vmatprep.subr.mxu0 0.0
    %145 = vmatpush1.msra.mxu0 0.0
    %146 = vmatprep.subr.mxu0 0.0
    %147 = vmatpush1.msra.mxu0 0.0
    %148 = vmatprep.subr.mxu0 0.0
    %149 = vmatpush1.msra.mxu0 0.0
    %150 = vmatprep.subr.mxu0 0.0
    %151 = vmatpush1.msra.mxu0 0.0
    %152 = vmatprep.subr.mxu0 0.0
    %153 = vmatpush1.msra.mxu0 0.0
    %154 = vmatprep.subr.mxu0 0.0
    %155 = vmatpush1.msra.mxu0 0.0
    %156 = vmatprep.subr.mxu0 0.0
    %157 = vmatpush1.msra.mxu0 0.0
    %158 = vmatprep.subr.mxu0 0.0
    %159 = vmatpush1.msra.mxu0 0.0
    %160 = vmatprep.subr.mxu0 0.0
    %161 = vmatpush1.msra.mxu0 0.0
    %162 = vmatprep.subr.mxu0 0.0
    %163 = vmatpush1.msra.mxu0 0.0
    %164 = vmatprep.subr.mxu0 0.0
    %165 = vmatpush1.msra.mxu0 0.0
    %166 = vmatprep.subr.mxu0 0.0
    %167 = vmatpush1.msra.mxu0 0.0
    %168 = vmatprep.subr.mxu0 0.0
    %169 = vmatpush1.msra.mxu0 0.0
    %170 = vmatprep.subr.mxu0 0.0
    %171 = vmatpush1.msra.mxu0 0.0
    %172 = vmatprep.subr.mxu0 0.0
    %173 = vmatpush1.msra.mxu0 0.0
    %174 = vmatprep.subr.mxu0 0.0
    %175 = vmatpush1.msra.mxu0 0.0
    %176 = vmatprep.subr.mxu0 0.0
    %177 = vmatpush1.msra.mxu0 0.0
    %178 = vmatprep.subr.mxu0 0.0
    %179 = vmatpush1.msra.mxu0 0.0
    %180 = vmatprep.subr.mxu0 0.0
    %181 = vmatpush1.msra.mxu0 0.0
    %182 = vmatprep.subr.mxu0 0.0
    %183 = vmatpush1.msra.mxu0 0.0
    %184 = vmatprep.subr.mxu0 0.0
    %185 = vmatpush1.msra.mxu0 0.0
    %186 = vmatprep.subr.mxu0 0.0
    %187 = vmatpush1.msra.mxu0 0.0
    %188 = vmatprep.mubr.f32.mxu0 0.0
    %189 = vmatmul.mubr.f32.gmra.mrb[0].mxu0 %v91
    %v190 = vpop.f32.mrb[0].mxu0
    %v191 = vadd.f32 %v77, %v190
    %v192 = vpop.f32.mrb[0].mxu0
    %v193 = vadd.f32 %v81, %v192
    %194 = vmatprep.mubr.f32.mxu0 0.0
    %195 = vmatmul.mubr.f32.gmra.mrb[0].mxu0 %v94
    %v196 = vpop.f32.mrb[0].mxu0
    %v197 = vadd.f32 %v77, %v196
    %v198 = vpop.f32.mrb[0].mxu0
    %v199 = vadd.f32 %v81, %v198
    %200 = vmatprep.mubr.f32.mxu0 0.0
    %201 = vmatmul.mubr.f32.gmra.mrb[0].mxu0 %v97
    %v202 = vpop.f32.mrb[0].mxu0
    %v203 = vadd.f32 %v77, %v202
    %v204 = vpop.f32.mrb[0].mxu0
    %v205 = vadd.f32 %v81, %v204
    %206 = vmatprep.mubr.f32.mxu0 0.0
    %207 = vmatmul.mubr.f32.gmra.mrb[0].mxu0 %v100
    %v208 = vpop.f32.mrb[0].mxu0
    %v209 = vadd.f32 %v77, %v208
    %v210 = vpop.f32.mrb[0].mxu0
    %v211 = vadd.f32 %v81, %v210
    %212 = vmatprep.mubr.f32.mxu0 0.0
    %213 = vmatmul.mubr.f32.gmra.mrb[0].mxu0 %v103
    %v214 = vpop.f32.mrb[0].mxu0
    %v215 = vadd.f32 %v77, %v214
    %v216 = vpop.f32.mrb[0].mxu0
    %v217 = vadd.f32 %v81, %v216
    %218 = vmatprep.mubr.f32.mxu0 0.0
    %219 = vmatmul.mubr.f32.gmra.mrb[0].mxu0 %v106
    %v220 = vpop.f32.mrb[0].mxu0
    %v221 = vadd.f32 %v77, %v220
    %v222 = vpop.f32.mrb[0].mxu0
    %v223 = vadd.f32 %v81, %v222
    %224 = vmatprep.mubr.f32.mxu0 0.0
    %225 = vmatmul.mubr.f32.gmra.mrb[0].mxu0 %v109
    %v226 = vpop.f32.mrb[0].mxu0
    %v227 = vadd.f32 %v77, %v226
    %v228 = vpop.f32.mrb[0].mxu0
    %v229 = vadd.f32 %v81, %v228
    %230 = vmatprep.mubr.f32.mxu0 0.0
    %231 = vmatmul.mubr.f32.gmra.mrb[0].mxu0 %v112
    %v232 = vpop.f32.mrb[0].mxu0
    %v233 = vadd.f32 %v77, %v232
    %v234 = vpop.f32.mrb[0].mxu0
    %v235 = vadd.f32 %v81, %v234
    %236 = vdwg.mxu0
    %237 = vmatprep.subr.mxu0 0.0
    %238 = vmatpush1.msra.mxu0 %v62
    %239 = vmatprep.subr.mxu0 0.0
    %240 = vmatpush1.msra.mxu0 %v65
    %241 = vmatprep.subr.mxu0 0.0
    %242 = vmatpush1.msra.mxu0 %v68
    %243 = vmatprep.subr.mxu0 0.0
    %244 = vmatpush1.msra.mxu0 %v122
    %245 = vmatprep.subr.mxu0 0.0
    %246 = vmatpush1.msra.mxu0 0.0
    %247 = vmatprep.subr.mxu0 0.0
    %248 = vmatpush1.msra.mxu0 0.0
    %249 = vmatprep.subr.mxu0 0.0
    %250 = vmatpush1.msra.mxu0 0.0
    %251 = vmatprep.subr.mxu0 0.0
    %252 = vmatpush1.msra.mxu0 0.0
    %253 = vmatprep.subr.mxu0 0.0
    %254 = vmatpush1.msra.mxu0 0.0
    %255 = vmatprep.subr.mxu0 0.0
    %256 = vmatpush1.msra.mxu0 0.0
    %257 = vmatprep.subr.mxu0 0.0
    %258 = vmatpush1.msra.mxu0 0.0
    %259 = vmatprep.subr.mxu0 0.0
    %260 = vmatpush1.msra.mxu0 0.0
    %261 = vmatprep.subr.mxu0 0.0
    %262 = vmatpush1.msra.mxu0 0.0
    %263 = vmatprep.subr.mxu0 0.0
    %264 = vmatpush1.msra.mxu0 0.0
    %265 = vmatprep.subr.mxu0 0.0
    %266 = vmatpush1.msra.mxu0 0.0
    %267 = vmatprep.subr.mxu0 0.0
    %268 = vmatpush1.msra.mxu0 0.0
    %269 = vmatprep.subr.mxu0 0.0
    %270 = vmatpush1.msra.mxu0 0.0
    %271 = vmatprep.subr.mxu0 0.0
    %272 = vmatpush1.msra.mxu0 0.0
    %273 = vmatprep.subr.mxu0 0.0
    %274 = vmatpush1.msra.mxu0 0.0
    %275 = vmatprep.subr.mxu0 0.0
    %276 = vmatpush1.msra.mxu0 0.0
    %277 = vmatprep.subr.mxu0 0.0
    %278 = vmatpush1.msra.mxu0 0.0
    %279 = vmatprep.subr.mxu0 0.0
    %280 = vmatpush1.msra.mxu0 0.0
    %281 = vmatprep.subr.mxu0 0.0
    %282 = vmatpush1.msra.mxu0 0.0
    %283 = vmatprep.subr.mxu0 0.0
    %284 = vmatpush1.msra.mxu0 0.0
    %285 = vmatprep.subr.mxu0 0.0
    %286 = vmatpush1.msra.mxu0 0.0
    %287 = vmatprep.subr.mxu0 0.0
    %288 = vmatpush1.msra.mxu0 0.0
    %289 = vmatprep.subr.mxu0 0.0
    %290 = vmatpush1.msra.mxu0 0.0
    %291 = vmatprep.subr.mxu0 0.0
    %292 = vmatpush1.msra.mxu0 0.0
    %293 = vmatprep.subr.mxu0 0.0
    %294 = vmatpush1.msra.mxu0 0.0
    %295 = vmatprep.subr.mxu0 0.0
    %296 = vmatpush1.msra.mxu0 0.0
    %297 = vmatprep.subr.mxu0 0.0
    %298 = vmatpush1.msra.mxu0 0.0
    %299 = vmatprep.subr.mxu0 0.0
    %300 = vmatpush1.msra.mxu0 0.0
    %301 = vmatprep.mubr.f32.mxu0 0.0
    %302 = vmatmul.mubr.f32.gmra.mrb[0].mxu0 %v91
    %v303 = vpop.f32.mrb[0].mxu0
    %v304 = vadd.f32 %v85, %v303
    %v305 = vpop.f32.mrb[0].mxu0
    %306 = vmatprep.mubr.f32.mxu0 0.0
    %307 = vmatmul.mubr.f32.gmra.mrb[0].mxu0 %v94
    %v308 = vpop.f32.mrb[0].mxu0
    %v309 = vadd.f32 %v85, %v308
    %v310 = vpop.f32.mrb[0].mxu0
    %311 = vmatprep.mubr.f32.mxu0 0.0
    %312 = vmatmul.mubr.f32.gmra.mrb[0].mxu0 %v97
    %v313 = vpop.f32.mrb[0].mxu0
    %v314 = vadd.f32 %v85, %v313
    %v315 = vpop.f32.mrb[0].mxu0
    %316 = vmatprep.mubr.f32.mxu0 0.0
    %317 = vmatmul.mubr.f32.gmra.mrb[0].mxu0 %v100
    %v318 = vpop.f32.mrb[0].mxu0
    %v319 = vadd.f32 %v85, %v318
    %v320 = vpop.f32.mrb[0].mxu0
    %321 = vmatprep.mubr.f32.mxu0 0.0
    %322 = vmatmul.mubr.f32.gmra.mrb[0].mxu0 %v103
    %v323 = vpop.f32.mrb[0].mxu0
    %v324 = vadd.f32 %v85, %v323
    %v325 = vpop.f32.mrb[0].mxu0
    %326 = vmatprep.mubr.f32.mxu0 0.0
    %327 = vmatmul.mubr.f32.gmra.mrb[0].mxu0 %v106
    %v328 = vpop.f32.mrb[0].mxu0
    %v329 = vadd.f32 %v85, %v328
    %v330 = vpop.f32.mrb[0].mxu0
    %331 = vmatprep.mubr.f32.mxu0 0.0
    %332 = vmatmul.mubr.f32.gmra.mrb[0].mxu0 %v109
    %v333 = vpop.f32.mrb[0].mxu0
    %v334 = vadd.f32 %v85, %v333
    %v335 = vpop.f32.mrb[0].mxu0
    %336 = vmatprep.mubr.f32.mxu0 0.0
    %337 = vmatmul.mubr.f32.gmra.mrb[0].mxu0 %v112
    %v338 = vpop.f32.mrb[0].mxu0
    %v339 = vadd.f32 %v85, %v338
    %v340 = vpop.f32.mrb[0].mxu0
    %341 = vdwg.mxu0
    %v342 = vld [vmem:[#allocation2] sm:$0xff]
    %v343 = vld [vmem:[#allocation2 + $0x8] sm:$0xff]
    %v344 = vld [vmem:[#allocation2 + $0x10] sm:$0xff]
    %v345 = vld [vmem:[#allocation2 + $0x18] sm:$0xff]
    %v346 = vld [vmem:[#allocation2 + $0x20] sm:$0xff]
    %v347 = vld [vmem:[#allocation2 + $0x28] sm:$0xff]
    %v348 = vld [vmem:[#allocation2 + $0x30] sm:$0xff]
    %v349 = vld [vmem:[#allocation2 + $0x38] sm:$0xff]
    %v350 = vld [vmem:[#allocation2 + $0x40] sm:$0xff]
    %v351 = vld [vmem:[#allocation2 + $0x48] sm:$0xff]
    %v352 = vld [vmem:[#allocation2 + $0x50] sm:$0xff]
    %v353 = vld [vmem:[#allocation2 + $0x58] sm:$0xff]
    %v354 = vld [vmem:[#allocation2 + $0x60] sm:$0xff]
    %v355 = vld [vmem:[#allocation2 + $0x68] sm:$0xff]
    %v356 = vld [vmem:[#allocation2 + $0x70] sm:$0xff]
    %v357 = vld [vmem:[#allocation2 + $0x78] sm:$0xff]
    %v358 = vld [vmem:[#allocation2 + $0x80] sm:$0xff]
    %v359 = vld [vmem:[#allocation2 + $0x88] sm:$0xff]
    %v360 = vld [vmem:[#allocation2 + $0x90] sm:$0xff]
    %v361 = vld [vmem:[#allocation2 + $0x98] sm:$0xff]
    %v362 = vld [vmem:[#allocation2 + $0xa0] sm:$0xff]
    %v363 = vld [vmem:[#allocation2 + $0xa8] sm:$0xff]
    %v364 = vld [vmem:[#allocation2 + $0xb0] sm:$0xff]
    %v365 = vld [vmem:[#allocation2 + $0xb8] sm:$0xff]
    %v366 = vld [vmem:[#allocation2 + $0xc0] sm:$0xff]
    %v367 = vld [vmem:[#allocation2 + $0xc8] sm:$0xff]
    %v368 = vld [vmem:[#allocation2 + $0xd0] sm:$0xff]
    %v369 = vld [vmem:[#allocation2 + $0xd8] sm:$0xff]
    %v370 = vld [vmem:[#allocation2 + $0xe0] sm:$0xff]
    %v371 = vld [vmem:[#allocation2 + $0xe8] sm:$0xff]
    %v372 = vld [vmem:[#allocation2 + $0xf0] sm:$0xff]
    %v373 = vld [vmem:[#allocation2 + $0xf8] sm:$0xff]
    %v374 = vld [vmem:[#allocation2 + $0x100] sm:$0xff]
    %v375 = vld [vmem:[#allocation2 + $0x108] sm:$0xff]
    %v376 = vld [vmem:[#allocation2 + $0x110] sm:$0xff]
    %v377 = vld [vmem:[#allocation2 + $0x118] sm:$0xff]
    %v378 = vld [vmem:[#allocation2 + $0x120] sm:$0xff]
    %v379 = vld [vmem:[#allocation2 + $0x128] sm:$0xff]
    %v380 = vld [vmem:[#allocation2 + $0x130] sm:$0xff]
    %v381 = vld [vmem:[#allocation2 + $0x138] sm:$0xff]
    %v382 = vld [vmem:[#allocation2 + $0x140] sm:$0xff]
    %v383 = vld [vmem:[#allocation2 + $0x148] sm:$0xff]
    %v384 = vld [vmem:[#allocation2 + $0x150] sm:$0xff]
    %v385 = vld [vmem:[#allocation2 + $0x158] sm:$0xff]
    %v386 = vld [vmem:[#allocation2 + $0x160] sm:$0xff]
    %v387 = vld [vmem:[#allocation2 + $0x168] sm:$0xff]
    %v388 = vld [vmem:[#allocation2 + $0x170] sm:$0xff]
    %v389 = vld [vmem:[#allocation2 + $0x178] sm:$0xff]
    %390 = vmatprep.subr.mxu0 %v343
    %391 = vmatpush1.msra.mxu0 %v342
    %392 = vmatprep.subr.mxu0 %v346
    %393 = vmatpush1.msra.mxu0 %v345
    %394 = vmatprep.subr.mxu0 %v349
    %395 = vmatpush1.msra.mxu0 %v348
    %396 = vmatprep.subr.mxu0 %v352
    %397 = vmatpush1.msra.mxu0 %v351
    %398 = vmatprep.subr.mxu0 %v355
    %399 = vmatpush1.msra.mxu0 %v354
    %400 = vmatprep.subr.mxu0 %v358
    %401 = vmatpush1.msra.mxu0 %v357
    %402 = vmatprep.subr.mxu0 %v361
    %403 = vmatpush1.msra.mxu0 %v360
    %404 = vmatprep.subr.mxu0 %v364
    %405 = vmatpush1.msra.mxu0 %v363
    %406 = vmatprep.subr.mxu0 %v367
    %407 = vmatpush1.msra.mxu0 %v366
    %408 = vmatprep.subr.mxu0 %v370
    %409 = vmatpush1.msra.mxu0 %v369
    %410 = vmatprep.subr.mxu0 %v373
    %411 = vmatpush1.msra.mxu0 %v372
    %412 = vmatprep.subr.mxu0 %v376
    %413 = vmatpush1.msra.mxu0 %v375
    %414 = vmatprep.subr.mxu0 %v379
    %415 = vmatpush1.msra.mxu0 %v378
    %416 = vmatprep.subr.mxu0 %v382
    %417 = vmatpush1.msra.mxu0 %v381
    %418 = vmatprep.subr.mxu0 %v385
    %419 = vmatpush1.msra.mxu0 %v384
    %420 = vmatprep.subr.mxu0 %v388
    %421 = vmatpush1.msra.mxu0 %v387
    %422 = vmatprep.subr.mxu0 0.0
    %423 = vmatpush1.msra.mxu0 0.0
    %424 = vmatprep.subr.mxu0 0.0
    %425 = vmatpush1.msra.mxu0 0.0
    %426 = vmatprep.subr.mxu0 0.0
    %427 = vmatpush1.msra.mxu0 0.0
    %428 = vmatprep.subr.mxu0 0.0
    %429 = vmatpush1.msra.mxu0 0.0
    %430 = vmatprep.subr.mxu0 0.0
    %431 = vmatpush1.msra.mxu0 0.0
    %432 = vmatprep.subr.mxu0 0.0
    %433 = vmatpush1.msra.mxu0 0.0
    %434 = vmatprep.subr.mxu0 0.0
    %435 = vmatpush1.msra.mxu0 0.0
    %436 = vmatprep.subr.mxu0 0.0
    %437 = vmatpush1.msra.mxu0 0.0
    %438 = vmatprep.subr.mxu0 0.0
    %439 = vmatpush1.msra.mxu0 0.0
    %440 = vmatprep.subr.mxu0 0.0
    %441 = vmatpush1.msra.mxu0 0.0
    %442 = vmatprep.subr.mxu0 0.0
    %443 = vmatpush1.msra.mxu0 0.0
    %444 = vmatprep.subr.mxu0 0.0
    %445 = vmatpush1.msra.mxu0 0.0
    %446 = vmatprep.subr.mxu0 0.0
    %447 = vmatpush1.msra.mxu0 0.0
    %448 = vmatprep.subr.mxu0 0.0
    %449 = vmatpush1.msra.mxu0 0.0
    %450 = vmatprep.subr.mxu0 0.0
    %451 = vmatpush1.msra.mxu0 0.0
    %452 = vmatprep.subr.mxu0 0.0
    %453 = vmatpush1.msra.mxu0 0.0
    %454 = vmatprep.mubr.f32.mxu0 0.0
    %455 = vmatmul.mubr.f32.gmra.mrb[0].mxu0 0.0
    %v456 = vpop.f32.mrb[0].mxu0
    %v457 = vadd.f32 0.0, %v456
    %v458 = vpop.f32.mrb[0].mxu0
    %v459 = vadd.f32 0.0, %v458
    %460 = vdwg.mxu0
    %461 = vmatprep.subr.mxu0 0.0
    %462 = vmatpush1.msra.mxu0 %v344
    %463 = vmatprep.subr.mxu0 0.0
    %464 = vmatpush1.msra.mxu0 %v347
    %465 = vmatprep.subr.mxu0 0.0
    %466 = vmatpush1.msra.mxu0 %v350
    %467 = vmatprep.subr.mxu0 0.0
    %468 = vmatpush1.msra.mxu0 %v353
    %469 = vmatprep.subr.mxu0 0.0
    %470 = vmatpush1.msra.mxu0 %v356
    %471 = vmatprep.subr.mxu0 0.0
    %472 = vmatpush1.msra.mxu0 %v359
    %473 = vmatprep.subr.mxu0 0.0
    %474 = vmatpush1.msra.mxu0 %v362
    %475 = vmatprep.subr.mxu0 0.0
    %476 = vmatpush1.msra.mxu0 %v365
    %477 = vmatprep.subr.mxu0 0.0
    %478 = vmatpush1.msra.mxu0 %v368
    %479 = vmatprep.subr.mxu0 0.0
    %480 = vmatpush1.msra.mxu0 %v371
    %481 = vmatprep.subr.mxu0 0.0
    %482 = vmatpush1.msra.mxu0 %v374
    %483 = vmatprep.subr.mxu0 0.0
    %484 = vmatpush1.msra.mxu0 %v377
    %485 = vmatprep.subr.mxu0 0.0
    %486 = vmatpush1.msra.mxu0 %v380
    %487 = vmatprep.subr.mxu0 0.0
    %488 = vmatpush1.msra.mxu0 %v383
    %489 = vmatprep.subr.mxu0 0.0
    %490 = vmatpush1.msra.mxu0 %v386
    %491 = vmatprep.subr.mxu0 0.0
    %492 = vmatpush1.msra.mxu0 %v389
    %493 = vmatprep.subr.mxu0 0.0
    %494 = vmatpush1.msra.mxu0 0.0
    %495 = vmatprep.subr.mxu0 0.0
    %496 = vmatpush1.msra.mxu0 0.0
    %497 = vmatprep.subr.mxu0 0.0
    %498 = vmatpush1.msra.mxu0 0.0
    %499 = vmatprep.subr.mxu0 0.0
    %500 = vmatpush1.msra.mxu0 0.0
    %501 = vmatprep.subr.mxu0 0.0
    %502 = vmatpush1.msra.mxu0 0.0
    %503 = vmatprep.subr.mxu0 0.0
    %504 = vmatpush1.msra.mxu0 0.0
    %505 = vmatprep.subr.mxu0 0.0
    %506 = vmatpush1.msra.mxu0 0.0
    %507 = vmatprep.subr.mxu0 0.0
    %508 = vmatpush1.msra.mxu0 0.0
    %509 = vmatprep.subr.mxu0 0.0
    %510 = vmatpush1.msra.mxu0 0.0
    %511 = vmatprep.subr.mxu0 0.0
    %512 = vmatpush1.msra.mxu0 0.0
    %513 = vmatprep.subr.mxu0 0.0
    %514 = vmatpush1.msra.mxu0 0.0
    %515 = vmatprep.subr.mxu0 0.0
    %516 = vmatpush1.msra.mxu0 0.0
    %517 = vmatprep.subr.mxu0 0.0
    %518 = vmatpush1.msra.mxu0 0.0
    %519 = vmatprep.subr.mxu0 0.0
    %520 = vmatpush1.msra.mxu0 0.0
    %521 = vmatprep.subr.mxu0 0.0
    %522 = vmatpush1.msra.mxu0 0.0
    %523 = vmatprep.subr.mxu0 0.0
    %524 = vmatpush1.msra.mxu0 0.0
    %525 = vmatprep.mubr.f32.mxu0 0.0
    %526 = vmatmul.mubr.f32.gmra.mrb[0].mxu0 0.0
    %v527 = vpop.f32.mrb[0].mxu0
    %v528 = vadd.f32 0.0, %v527
    %v529 = vpop.f32.mrb[0].mxu0
    %530 = vdwg.mxu0
    %v531 = vadd.f32 %v191, %v457
    %v532 = vxor.u32 %v531, 2147483648
    %v533 = vmul.f32 %v532, 1.442695
    %v534 = vpow.pop %v533
    %v535 = vadd.f32 %v534, 1.0
    %v536 = vrcp.pop %v535
    %v537 = vmul.f32 1.0, %v536
    %v538 = vadd.f32 %v193, %v459
    %v539 = vxor.u32 %v538, 2147483648
    %v540 = vmul.f32 %v539, 1.442695
    %v541 = vpow.pop %v540
    %v542 = vadd.f32 %v541, 1.0
    %v543 = vrcp.pop %v542
    %v544 = vmul.f32 1.0, %v543
    %v545 = vadd.f32 %v537, %v528
    %v546 = vadd.f32 %v304, %v545
    %v547 = vtanh.pop %v546
    %v548 = vsub.f32 0.0, %v547
    %v549 = vmul.f32 %v544, %v548
    %v550 = vadd.f32 %v547, %v549
    %551 = vmatprep.subr.mxu0 %v343
    %552 = vmatpush1.msra.mxu0 %v342
    %553 = vmatprep.subr.mxu0 %v346
    %554 = vmatpush1.msra.mxu0 %v345
    %555 = vmatprep.subr.mxu0 %v349
    %556 = vmatpush1.msra.mxu0 %v348
    %557 = vmatprep.subr.mxu0 %v352
    %558 = vmatpush1.msra.mxu0 %v351
    %559 = vmatprep.subr.mxu0 %v355
    %560 = vmatpush1.msra.mxu0 %v354
    %561 = vmatprep.subr.mxu0 %v358
    %562 = vmatpush1.msra.mxu0 %v357
    %563 = vmatprep.subr.mxu0 %v361
    %564 = vmatpush1.msra.mxu0 %v360
    %565 = vmatprep.subr.mxu0 %v364
    %566 = vmatpush1.msra.mxu0 %v363
    %567 = vmatprep.subr.mxu0 %v367
    %568 = vmatpush1.msra.mxu0 %v366
    %569 = vmatprep.subr.mxu0 %v370
    %570 = vmatpush1.msra.mxu0 %v369
    %571 = vmatprep.subr.mxu0 %v373
    %572 = vmatpush1.msra.mxu0 %v372
    %573 = vmatprep.subr.mxu0 %v376
    %574 = vmatpush1.msra.mxu0 %v375
    %575 = vmatprep.subr.mxu0 %v379
    %576 = vmatpush1.msra.mxu0 %v378
    %577 = vmatprep.subr.mxu0 %v382
    %578 = vmatpush1.msra.mxu0 %v381
    %579 = vmatprep.subr.mxu0 %v385
    %580 = vmatpush1.msra.mxu0 %v384
    %581 = vmatprep.subr.mxu0 %v388
    %582 = vmatpush1.msra.mxu0 %v387
    %583 = vmatprep.subr.mxu0 0.0
    %584 = vmatpush1.msra.mxu0 0.0
    %585 = vmatprep.subr.mxu0 0.0
    %586 = vmatpush1.msra.mxu0 0.0
    %587 = vmatprep.subr.mxu0 0.0
    %588 = vmatpush1.msra.mxu0 0.0
    %589 = vmatprep.subr.mxu0 0.0
    %590 = vmatpush1.msra.mxu0 0.0
    %591 = vmatprep.subr.mxu0 0.0
    %592 = vmatpush1.msra.mxu0 0.0
    %593 = vmatprep.subr.mxu0 0.0
    %594 = vmatpush1.msra.mxu0 0.0
    %595 = vmatprep.subr.mxu0 0.0
    %596 = vmatpush1.msra.mxu0 0.0
    %597 = vmatprep.subr.mxu0 0.0
    %598 = vmatpush1.msra.mxu0 0.0
    %599 = vmatprep.subr.mxu0 0.0
    %600 = vmatpush1.msra.mxu0 0.0
    %601 = vmatprep.subr.mxu0 0.0
    %602 = vmatpush1.msra.mxu0 0.0
    %603 = vmatprep.subr.mxu0 0.0
    %604 = vmatpush1.msra.mxu0 0.0
    %605 = vmatprep.subr.mxu0 0.0
    %606 = vmatpush1.msra.mxu0 0.0
    %607 = vmatprep.subr.mxu0 0.0
    %608 = vmatpush1.msra.mxu0 0.0
    %609 = vmatprep.subr.mxu0 0.0
    %610 = vmatpush1.msra.mxu0 0.0
    %611 = vmatprep.subr.mxu0 0.0
    %612 = vmatpush1.msra.mxu0 0.0
    %613 = vmatprep.subr.mxu0 0.0
    %614 = vmatpush1.msra.mxu0 0.0
    %615 = vmatprep.mubr.f32.mxu0 0.0
    %616 = vmatmul.mubr.f32.gmra.mrb[0].mxu0 %v550
    %v617 = vpop.f32.mrb[0].mxu0
    %v618 = vadd.f32 0.0, %v617
    %v619 = vpop.f32.mrb[0].mxu0
    %v620 = vadd.f32 0.0, %v619
    %621 = vdwg.mxu0
    %622 = vmatprep.subr.mxu0 0.0
    %623 = vmatpush1.msra.mxu0 %v344
    %624 = vmatprep.subr.mxu0 0.0
    %625 = vmatpush1.msra.mxu0 %v347
    %626 = vmatprep.subr.mxu0 0.0
    %627 = vmatpush1.msra.mxu0 %v350
    %628 = vmatprep.subr.mxu0 0.0
    %629 = vmatpush1.msra.mxu0 %v353
    %630 = vmatprep.subr.mxu0 0.0
    %631 = vmatpush1.msra.mxu0 %v356
    %632 = vmatprep.subr.mxu0 0.0
    %633 = vmatpush1.msra.mxu0 %v359
    %634 = vmatprep.subr.mxu0 0.0
    %635 = vmatpush1.msra.mxu0 %v362
    %636 = vmatprep.subr.mxu0 0.0
    %637 = vmatpush1.msra.mxu0 %v365
    %638 = vmatprep.subr.mxu0 0.0
    %639 = vmatpush1.msra.mxu0 %v368
    %640 = vmatprep.subr.mxu0 0.0
    %641 = vmatpush1.msra.mxu0 %v371
    %642 = vmatprep.subr.mxu0 0.0
    %643 = vmatpush1.msra.mxu0 %v374
    %644 = vmatprep.subr.mxu0 0.0
    %645 = vmatpush1.msra.mxu0 %v377
    %646 = vmatprep.subr.mxu0 0.0
    %647 = vmatpush1.msra.mxu0 %v380
    %648 = vmatprep.subr.mxu0 0.0
    %649 = vmatpush1.msra.mxu0 %v383
    %650 = vmatprep.subr.mxu0 0.0
    %651 = vmatpush1.msra.mxu0 %v386
    %652 = vmatprep.subr.mxu0 0.0
    %653 = vmatpush1.msra.mxu0 %v389
    %654 = vmatprep.subr.mxu0 0.0
    %655 = vmatpush1.msra.mxu0 0.0
    %656 = vmatprep.subr.mxu0 0.0
    %657 = vmatpush1.msra.mxu0 0.0
    %658 = vmatprep.subr.mxu0 0.0
    %659 = vmatpush1.msra.mxu0 0.0
    %660 = vmatprep.subr.mxu0 0.0
    %661 = vmatpush1.msra.mxu0 0.0
    %662 = vmatprep.subr.mxu0 0.0
    %663 = vmatpush1.msra.mxu0 0.0
    %664 = vmatprep.subr.mxu0 0.0
    %665 = vmatpush1.msra.mxu0 0.0
    %666 = vmatprep.subr.mxu0 0.0
    %667 = vmatpush1.msra.mxu0 0.0
    %668 = vmatprep.subr.mxu0 0.0
    %669 = vmatpush1.msra.mxu0 0.0
    %670 = vmatprep.subr.mxu0 0.0
    %671 = vmatpush1.msra.mxu0 0.0
    %672 = vmatprep.subr.mxu0 0.0
    %673 = vmatpush1.msra.mxu0 0.0
    %674 = vmatprep.subr.mxu0 0.0
    %675 = vmatpush1.msra.mxu0 0.0
    %676 = vmatprep.subr.mxu0 0.0
    %677 = vmatpush1.msra.mxu0 0.0
    %678 = vmatprep.subr.mxu0 0.0
    %679 = vmatpush1.msra.mxu0 0.0
    %680 = vmatprep.subr.mxu0 0.0
    %681 = vmatpush1.msra.mxu0 0.0
    %682 = vmatprep.subr.mxu0 0.0
    %683 = vmatpush1.msra.mxu0 0.0
    %684 = vmatprep.subr.mxu0 0.0
    %685 = vmatpush1.msra.mxu0 0.0
    %686 = vmatprep.mubr.f32.mxu0 0.0
    %687 = vmatmul.mubr.f32.gmra.mrb[0].mxu0 %v550
    %v688 = vpop.f32.mrb[0].mxu0
    %v689 = vadd.f32 0.0, %v688
    %v690 = vpop.f32.mrb[0].mxu0
    %691 = vdwg.mxu0
    %v692 = vadd.f32 %v197, %v618
    %v693 = vxor.u32 %v692, 2147483648
    %v694 = vmul.f32 %v693, 1.442695
    %v695 = vpow.pop %v694
    %v696 = vadd.f32 %v695, 1.0
    %v697 = vrcp.pop %v696
    %v698 = vmul.f32 1.0, %v697
    %v699 = vadd.f32 %v199, %v620
    %v700 = vxor.u32 %v699, 2147483648
    %v701 = vmul.f32 %v700, 1.442695
    %v702 = vpow.pop %v701
    %v703 = vadd.f32 %v702, 1.0
    %v704 = vrcp.pop %v703
    %v705 = vmul.f32 1.0, %v704
    %v706 = vadd.f32 %v698, %v689
    %v707 = vadd.f32 %v309, %v706
    %v708 = vtanh.pop %v707
    %v709 = vsub.f32 %v550, %v708
    %v710 = vmul.f32 %v705, %v709
    %v711 = vadd.f32 %v708, %v710
    %712 = vmatprep.subr.mxu0 %v343
    %713 = vmatpush1.msra.mxu0 %v342
    %714 = vmatprep.subr.mxu0 %v346
    %715 = vmatpush1.msra.mxu0 %v345
    %716 = vmatprep.subr.mxu0 %v349
    %717 = vmatpush1.msra.mxu0 %v348
    %718 = vmatprep.subr.mxu0 %v352
    %719 = vmatpush1.msra.mxu0 %v351
    %720 = vmatprep.subr.mxu0 %v355
    %721 = vmatpush1.msra.mxu0 %v354
    %722 = vmatprep.subr.mxu0 %v358
    %723 = vmatpush1.msra.mxu0 %v357
    %724 = vmatprep.subr.mxu0 %v361
    %725 = vmatpush1.msra.mxu0 %v360
    %726 = vmatprep.subr.mxu0 %v364
    %727 = vmatpush1.msra.mxu0 %v363
    %728 = vmatprep.subr.mxu0 %v367
    %729 = vmatpush1.msra.mxu0 %v366
    %730 = vmatprep.subr.mxu0 %v370
    %731 = vmatpush1.msra.mxu0 %v369
    %732 = vmatprep.subr.mxu0 %v373
    %733 = vmatpush1.msra.mxu0 %v372
    %734 = vmatprep.subr.mxu0 %v376
    %735 = vmatpush1.msra.mxu0 %v375
    %736 = vmatprep.subr.mxu0 %v379
    %737 = vmatpush1.msra.mxu0 %v378
    %738 = vmatprep.subr.mxu0 %v382
    %739 = vmatpush1.msra.mxu0 %v381
    %740 = vmatprep.subr.mxu0 %v385
    %741 = vmatpush1.msra.mxu0 %v384
    %742 = vmatprep.subr.mxu0 %v388
    %743 = vmatpush1.msra.mxu0 %v387
    %744 = vmatprep.subr.mxu0 0.0
    %745 = vmatpush1.msra.mxu0 0.0
    %746 = vmatprep.subr.mxu0 0.0
    %747 = vmatpush1.msra.mxu0 0.0
    %748 = vmatprep.subr.mxu0 0.0
    %749 = vmatpush1.msra.mxu0 0.0
    %750 = vmatprep.subr.mxu0 0.0
    %751 = vmatpush1.msra.mxu0 0.0
    %752 = vmatprep.subr.mxu0 0.0
    %753 = vmatpush1.msra.mxu0 0.0
    %754 = vmatprep.subr.mxu0 0.0
    %755 = vmatpush1.msra.mxu0 0.0
    %756 = vmatprep.subr.mxu0 0.0
    %757 = vmatpush1.msra.mxu0 0.0
    %758 = vmatprep.subr.mxu0 0.0
    %759 = vmatpush1.msra.mxu0 0.0
    %760 = vmatprep.subr.mxu0 0.0
    %761 = vmatpush1.msra.mxu0 0.0
    %762 = vmatprep.subr.mxu0 0.0
    %763 = vmatpush1.msra.mxu0 0.0
    %764 = vmatprep.subr.mxu0 0.0
    %765 = vmatpush1.msra.mxu0 0.0
    %766 = vmatprep.subr.mxu0 0.0
    %767 = vmatpush1.msra.mxu0 0.0
    %768 = vmatprep.subr.mxu0 0.0
    %769 = vmatpush1.msra.mxu0 0.0
    %770 = vmatprep.subr.mxu0 0.0
    %771 = vmatpush1.msra.mxu0 0.0
    %772 = vmatprep.subr.mxu0 0.0
    %773 = vmatpush1.msra.mxu0 0.0
    %774 = vmatprep.subr.mxu0 0.0
    %775 = vmatpush1.msra.mxu0 0.0
    %776 = vmatprep.mubr.f32.mxu0 0.0
    %777 = vmatmul.mubr.f32.gmra.mrb[0].mxu0 %v711
    %v778 = vpop.f32.mrb[0].mxu0
    %v779 = vadd.f32 0.0, %v778
    %v780 = vpop.f32.mrb[0].mxu0
    %v781 = vadd.f32 0.0, %v780
    %782 = vdwg.mxu0
    %783 = vmatprep.subr.mxu0 0.0
    %784 = vmatpush1.msra.mxu0 %v344
    %785 = vmatprep.subr.mxu0 0.0
    %786 = vmatpush1.msra.mxu0 %v347
    %787 = vmatprep.subr.mxu0 0.0
    %788 = vmatpush1.msra.mxu0 %v350
    %789 = vmatprep.subr.mxu0 0.0
    %790 = vmatpush1.msra.mxu0 %v353
    %791 = vmatprep.subr.mxu0 0.0
    %792 = vmatpush1.msra.mxu0 %v356
    %793 = vmatprep.subr.mxu0 0.0
    %794 = vmatpush1.msra.mxu0 %v359
    %795 = vmatprep.subr.mxu0 0.0
    %796 = vmatpush1.msra.mxu0 %v362
    %797 = vmatprep.subr.mxu0 0.0
    %798 = vmatpush1.msra.mxu0 %v365
    %799 = vmatprep.subr.mxu0 0.0
    %800 = vmatpush1.msra.mxu0 %v368
    %801 = vmatprep.subr.mxu0 0.0
    %802 = vmatpush1.msra.mxu0 %v371
    %803 = vmatprep.subr.mxu0 0.0
    %804 = vmatpush1.msra.mxu0 %v374
    %805 = vmatprep.subr.mxu0 0.0
    %806 = vmatpush1.msra.mxu0 %v377
    %807 = vmatprep.subr.mxu0 0.0
    %808 = vmatpush1.msra.mxu0 %v380
    %809 = vmatprep.subr.mxu0 0.0
    %810 = vmatpush1.msra.mxu0 %v383
    %811 = vmatprep.subr.mxu0 0.0
    %812 = vmatpush1.msra.mxu0 %v386
    %813 = vmatprep.subr.mxu0 0.0
    %814 = vmatpush1.msra.mxu0 %v389
    %815 = vmatprep.subr.mxu0 0.0
    %816 = vmatpush1.msra.mxu0 0.0
    %817 = vmatprep.subr.mxu0 0.0
    %818 = vmatpush1.msra.mxu0 0.0
    %819 = vmatprep.subr.mxu0 0.0
    %820 = vmatpush1.msra.mxu0 0.0
    %821 = vmatprep.subr.mxu0 0.0
    %822 = vmatpush1.msra.mxu0 0.0
    %823 = vmatprep.subr.mxu0 0.0
    %824 = vmatpush1.msra.mxu0 0.0
    %825 = vmatprep.subr.mxu0 0.0
    %826 = vmatpush1.msra.mxu0 0.0
    %827 = vmatprep.subr.mxu0 0.0
    %828 = vmatpush1.msra.mxu0 0.0
    %829 = vmatprep.subr.mxu0 0.0
    %830 = vmatpush1.msra.mxu0 0.0
    %831 = vmatprep.subr.mxu0 0.0
    %832 = vmatpush1.msra.mxu0 0.0
    %833 = vmatprep.subr.mxu0 0.0
    %834 = vmatpush1.msra.mxu0 0.0
    %835 = vmatprep.subr.mxu0 0.0
    %836 = vmatpush1.msra.mxu0 0.0
    %837 = vmatprep.subr.mxu0 0.0
    %838 = vmatpush1.msra.mxu0 0.0
    %839 = vmatprep.subr.mxu0 0.0
    %840 = vmatpush1.msra.mxu0 0.0
    %841 = vmatprep.subr.mxu0 0.0
    %842 = vmatpush1.msra.mxu0 0.0
    %843 = vmatprep.subr.mxu0 0.0
    %844 = vmatpush1.msra.mxu0 0.0
    %845 = vmatprep.subr.mxu0 0.0
    %846 = vmatpush1.msra.mxu0 0.0
    %847 = vmatprep.mubr.f32.mxu0 0.0
    %848 = vmatmul.mubr.f32.gmra.mrb[0].mxu0 %v711
    %v849 = vpop.f32.mrb[0].mxu0
    %v850 = vadd.f32 0.0, %v849
    %v851 = vpop.f32.mrb[0].mxu0
    %852 = vdwg.mxu0
    %v853 = vadd.f32 %v203, %v779
    %v854 = vxor.u32 %v853, 2147483648
    %v855 = vmul.f32 %v854, 1.442695
    %v856 = vpow.pop %v855
    %v857 = vadd.f32 %v856, 1.0
    %v858 = vrcp.pop %v857
    %v859 = vmul.f32 1.0, %v858
    %v860 = vadd.f32 %v205, %v781
    %v861 = vxor.u32 %v860, 2147483648
    %v862 = vmul.f32 %v861, 1.442695
    %v863 = vpow.pop %v862
    %v864 = vadd.f32 %v863, 1.0
    %v865 = vrcp.pop %v864
    %v866 = vmul.f32 1.0, %v865
    %v867 = vadd.f32 %v859, %v850
    %v868 = vadd.f32 %v314, %v867
    %v869 = vtanh.pop %v868
    %v870 = vsub.f32 %v711, %v869
    %v871 = vmul.f32 %v866, %v870
    %v872 = vadd.f32 %v869, %v871
    %873 = vmatprep.subr.mxu0 %v343
    %874 = vmatpush1.msra.mxu0 %v342
    %875 = vmatprep.subr.mxu0 %v346
    %876 = vmatpush1.msra.mxu0 %v345
    %877 = vmatprep.subr.mxu0 %v349
    %878 = vmatpush1.msra.mxu0 %v348
    %879 = vmatprep.subr.mxu0 %v352
    %880 = vmatpush1.msra.mxu0 %v351
    %881 = vmatprep.subr.mxu0 %v355
    %882 = vmatpush1.msra.mxu0 %v354
    %883 = vmatprep.subr.mxu0 %v358
    %884 = vmatpush1.msra.mxu0 %v357
    %885 = vmatprep.subr.mxu0 %v361
    %886 = vmatpush1.msra.mxu0 %v360
    %887 = vmatprep.subr.mxu0 %v364
    %888 = vmatpush1.msra.mxu0 %v363
    %889 = vmatprep.subr.mxu0 %v367
    %890 = vmatpush1.msra.mxu0 %v366
    %891 = vmatprep.subr.mxu0 %v370
    %892 = vmatpush1.msra.mxu0 %v369
    %893 = vmatprep.subr.mxu0 %v373
    %894 = vmatpush1.msra.mxu0 %v372
    %895 = vmatprep.subr.mxu0 %v376
    %896 = vmatpush1.msra.mxu0 %v375
    %897 = vmatprep.subr.mxu0 %v379
    %898 = vmatpush1.msra.mxu0 %v378
    %899 = vmatprep.subr.mxu0 %v382
    %900 = vmatpush1.msra.mxu0 %v381
    %901 = vmatprep.subr.mxu0 %v385
    %902 = vmatpush1.msra.mxu0 %v384
    %903 = vmatprep.subr.mxu0 %v388
    %904 = vmatpush1.msra.mxu0 %v387
    %905 = vmatprep.subr.mxu0 0.0
    %906 = vmatpush1.msra.mxu0 0.0
    %907 = vmatprep.subr.mxu0 0.0
    %908 = vmatpush1.msra.mxu0 0.0
    %909 = vmatprep.subr.mxu0 0.0
    %910 = vmatpush1.msra.mxu0 0.0
    %911 = vmatprep.subr.mxu0 0.0
    %912 = vmatpush1.msra.mxu0 0.0
    %913 = vmatprep.subr.mxu0 0.0
    %914 = vmatpush1.msra.mxu0 0.0
    %915 = vmatprep.subr.mxu0 0.0
    %916 = vmatpush1.msra.mxu0 0.0
    %917 = vmatprep.subr.mxu0 0.0
    %918 = vmatpush1.msra.mxu0 0.0
    %919 = vmatprep.subr.mxu0 0.0
    %920 = vmatpush1.msra.mxu0 0.0
    %921 = vmatprep.subr.mxu0 0.0
    %922 = vmatpush1.msra.mxu0 0.0
    %923 = vmatprep.subr.mxu0 0.0
    %924 = vmatpush1.msra.mxu0 0.0
    %925 = vmatprep.subr.mxu0 0.0
    %926 = vmatpush1.msra.mxu0 0.0
    %927 = vmatprep.subr.mxu0 0.0
    %928 = vmatpush1.msra.mxu0 0.0
    %929 = vmatprep.subr.mxu0 0.0
    %930 = vmatpush1.msra.mxu0 0.0
    %931 = vmatprep.subr.mxu0 0.0
    %932 = vmatpush1.msra.mxu0 0.0
    %933 = vmatprep.subr.mxu0 0.0
    %934 = vmatpush1.msra.mxu0 0.0
    %935 = vmatprep.subr.mxu0 0.0
    %936 = vmatpush1.msra.mxu0 0.0
    %937 = vmatprep.mubr.f32.mxu0 0.0
    %938 = vmatmul.mubr.f32.gmra.mrb[0].mxu0 %v872
    %v939 = vpop.f32.mrb[0].mxu0
    %v940 = vadd.f32 0.0, %v939
    %v941 = vpop.f32.mrb[0].mxu0
    %v942 = vadd.f32 0.0, %v941
    %943 = vdwg.mxu0
    %944 = vmatprep.subr.mxu0 0.0
    %945 = vmatpush1.msra.mxu0 %v344
    %946 = vmatprep.subr.mxu0 0.0
    %947 = vmatpush1.msra.mxu0 %v347
    %948 = vmatprep.subr.mxu0 0.0
    %949 = vmatpush1.msra.mxu0 %v350
    %950 = vmatprep.subr.mxu0 0.0
    %951 = vmatpush1.msra.mxu0 %v353
    %952 = vmatprep.subr.mxu0 0.0
    %953 = vmatpush1.msra.mxu0 %v356
    %954 = vmatprep.subr.mxu0 0.0
    %955 = vmatpush1.msra.mxu0 %v359
    %956 = vmatprep.subr.mxu0 0.0
    %957 = vmatpush1.msra.mxu0 %v362
    %958 = vmatprep.subr.mxu0 0.0
    %959 = vmatpush1.msra.mxu0 %v365
    %960 = vmatprep.subr.mxu0 0.0
    %961 = vmatpush1.msra.mxu0 %v368
    %962 = vmatprep.subr.mxu0 0.0
    %963 = vmatpush1.msra.mxu0 %v371
    %964 = vmatprep.subr.mxu0 0.0
    %965 = vmatpush1.msra.mxu0 %v374
    %966 = vmatprep.subr.mxu0 0.0
    %967 = vmatpush1.msra.mxu0 %v377
    %968 = vmatprep.subr.mxu0 0.0
    %969 = vmatpush1.msra.mxu0 %v380
    %970 = vmatprep.subr.mxu0 0.0
    %971 = vmatpush1.msra.mxu0 %v383
    %972 = vmatprep.subr.mxu0 0.0
    %973 = vmatpush1.msra.mxu0 %v386
    %974 = vmatprep.subr.mxu0 0.0
    %975 = vmatpush1.msra.mxu0 %v389
    %976 = vmatprep.subr.mxu0 0.0
    %977 = vmatpush1.msra.mxu0 0.0
    %978 = vmatprep.subr.mxu0 0.0
    %979 = vmatpush1.msra.mxu0 0.0
    %980 = vmatprep.subr.mxu0 0.0
    %981 = vmatpush1.msra.mxu0 0.0
    %982 = vmatprep.subr.mxu0 0.0
    %983 = vmatpush1.msra.mxu0 0.0
    %984 = vmatprep.subr.mxu0 0.0
    %985 = vmatpush1.msra.mxu0 0.0
    %986 = vmatprep.subr.mxu0 0.0
    %987 = vmatpush1.msra.mxu0 0.0
    %988 = vmatprep.subr.mxu0 0.0
    %989 = vmatpush1.msra.mxu0 0.0
    %990 = vmatprep.subr.mxu0 0.0
    %991 = vmatpush1.msra.mxu0 0.0
    %992 = vmatprep.subr.mxu0 0.0
    %993 = vmatpush1.msra.mxu0 0.0
    %994 = vmatprep.subr.mxu0 0.0
    %995 = vmatpush1.msra.mxu0 0.0
    %996 = vmatprep.subr.mxu0 0.0
    %997 = vmatpush1.msra.mxu0 0.0
    %998 = vmatprep.subr.mxu0 0.0
    %999 = vmatpush1.msra.mxu0 0.0
    %1000 = vmatprep.subr.mxu0 0.0
    %1001 = vmatpush1.msra.mxu0 0.0
    %1002 = vmatprep.subr.mxu0 0.0
    %1003 = vmatpush1.msra.mxu0 0.0
    %1004 = vmatprep.subr.mxu0 0.0
    %1005 = vmatpush1.msra.mxu0 0.0
    %1006 = vmatprep.subr.mxu0 0.0
    %1007 = vmatpush1.msra.mxu0 0.0
    %1008 = vmatprep.mubr.f32.mxu0 0.0
    %1009 = vmatmul.mubr.f32.gmra.mrb[0].mxu0 %v872
    %v1010 = vpop.f32.mrb[0].mxu0
    %v1011 = vadd.f32 0.0, %v1010
    %v1012 = vpop.f32.mrb[0].mxu0
    %1013 = vdwg.mxu0
    %v1014 = vadd.f32 %v209, %v940
    %v1015 = vxor.u32 %v1014, 2147483648
    %v1016 = vmul.f32 %v1015, 1.442695
    %v1017 = vpow.pop %v1016
    %v1018 = vadd.f32 %v1017, 1.0
    %v1019 = vrcp.pop %v1018
    %v1020 = vmul.f32 1.0, %v1019
    %v1021 = vadd.f32 %v211, %v942
    %v1022 = vxor.u32 %v1021, 2147483648
    %v1023 = vmul.f32 %v1022, 1.442695
    %v1024 = vpow.pop %v1023
    %v1025 = vadd.f32 %v1024, 1.0
    %v1026 = vrcp.pop %v1025
    %v1027 = vmul.f32 1.0, %v1026
    %v1028 = vadd.f32 %v1020, %v1011
    %v1029 = vadd.f32 %v319, %v1028
    %v1030 = vtanh.pop %v1029
    %v1031 = vsub.f32 %v872, %v1030
    %v1032 = vmul.f32 %v1027, %v1031
    %v1033 = vadd.f32 %v1030, %v1032
    %1034 = vmatprep.subr.mxu0 %v343
    %1035 = vmatpush1.msra.mxu0 %v342
    %1036 = vmatprep.subr.mxu0 %v346
    %1037 = vmatpush1.msra.mxu0 %v345
    %1038 = vmatprep.subr.mxu0 %v349
    %1039 = vmatpush1.msra.mxu0 %v348
    %1040 = vmatprep.subr.mxu0 %v352
    %1041 = vmatpush1.msra.mxu0 %v351
    %1042 = vmatprep.subr.mxu0 %v355
    %1043 = vmatpush1.msra.mxu0 %v354
    %1044 = vmatprep.subr.mxu0 %v358
    %1045 = vmatpush1.msra.mxu0 %v357
    %1046 = vmatprep.subr.mxu0 %v361
    %1047 = vmatpush1.msra.mxu0 %v360
    %1048 = vmatprep.subr.mxu0 %v364
    %1049 = vmatpush1.msra.mxu0 %v363
    %1050 = vmatprep.subr.mxu0 %v367
    %1051 = vmatpush1.msra.mxu0 %v366
    %1052 = vmatprep.subr.mxu0 %v370
    %1053 = vmatpush1.msra.mxu0 %v369
    %1054 = vmatprep.subr.mxu0 %v373
    %1055 = vmatpush1.msra.mxu0 %v372
    %1056 = vmatprep.subr.mxu0 %v376
    %1057 = vmatpush1.msra.mxu0 %v375
    %1058 = vmatprep.subr.mxu0 %v379
    %1059 = vmatpush1.msra.mxu0 %v378
    %1060 = vmatprep.subr.mxu0 %v382
    %1061 = vmatpush1.msra.mxu0 %v381
    %1062 = vmatprep.subr.mxu0 %v385
    %1063 = vmatpush1.msra.mxu0 %v384
    %1064 = vmatprep.subr.mxu0 %v388
    %1065 = vmatpush1.msra.mxu0 %v387
    %1066 = vmatprep.subr.mxu0 0.0
    %1067 = vmatpush1.msra.mxu0 0.0
    %1068 = vmatprep.subr.mxu0 0.0
    %1069 = vmatpush1.msra.mxu0 0.0
    %1070 = vmatprep.subr.mxu0 0.0
    %1071 = vmatpush1.msra.mxu0 0.0
    %1072 = vmatprep.subr.mxu0 0.0
    %1073 = vmatpush1.msra.mxu0 0.0
    %1074 = vmatprep.subr.mxu0 0.0
    %1075 = vmatpush1.msra.mxu0 0.0
    %1076 = vmatprep.subr.mxu0 0.0
    %1077 = vmatpush1.msra.mxu0 0.0
    %1078 = vmatprep.subr.mxu0 0.0
    %1079 = vmatpush1.msra.mxu0 0.0
    %1080 = vmatprep.subr.mxu0 0.0
    %1081 = vmatpush1.msra.mxu0 0.0
    %1082 = vmatprep.subr.mxu0 0.0
    %1083 = vmatpush1.msra.mxu0 0.0
    %1084 = vmatprep.subr.mxu0 0.0
    %1085 = vmatpush1.msra.mxu0 0.0
    %1086 = vmatprep.subr.mxu0 0.0
    %1087 = vmatpush1.msra.mxu0 0.0
    %1088 = vmatprep.subr.mxu0 0.0
    %1089 = vmatpush1.msra.mxu0 0.0
    %1090 = vmatprep.subr.mxu0 0.0
    %1091 = vmatpush1.msra.mxu0 0.0
    %1092 = vmatprep.subr.mxu0 0.0
    %1093 = vmatpush1.msra.mxu0 0.0
    %1094 = vmatprep.subr.mxu0 0.0
    %1095 = vmatpush1.msra.mxu0 0.0
    %1096 = vmatprep.subr.mxu0 0.0
    %1097 = vmatpush1.msra.mxu0 0.0
    %1098 = vmatprep.mubr.f32.mxu0 0.0
    %1099 = vmatmul.mubr.f32.gmra.mrb[0].mxu0 %v1033
    %v1100 = vpop.f32.mrb[0].mxu0
    %v1101 = vadd.f32 0.0, %v1100
    %v1102 = vpop.f32.mrb[0].mxu0
    %v1103 = vadd.f32 0.0, %v1102
    %1104 = vdwg.mxu0
    %1105 = vmatprep.subr.mxu0 0.0
    %1106 = vmatpush1.msra.mxu0 %v344
    %1107 = vmatprep.subr.mxu0 0.0
    %1108 = vmatpush1.msra.mxu0 %v347
    %1109 = vmatprep.subr.mxu0 0.0
    %1110 = vmatpush1.msra.mxu0 %v350
    %1111 = vmatprep.subr.mxu0 0.0
    %1112 = vmatpush1.msra.mxu0 %v353
    %1113 = vmatprep.subr.mxu0 0.0
    %1114 = vmatpush1.msra.mxu0 %v356
    %1115 = vmatprep.subr.mxu0 0.0
    %1116 = vmatpush1.msra.mxu0 %v359
    %1117 = vmatprep.subr.mxu0 0.0
    %1118 = vmatpush1.msra.mxu0 %v362
    %1119 = vmatprep.subr.mxu0 0.0
    %1120 = vmatpush1.msra.mxu0 %v365
    %1121 = vmatprep.subr.mxu0 0.0
    %1122 = vmatpush1.msra.mxu0 %v368
    %1123 = vmatprep.subr.mxu0 0.0
    %1124 = vmatpush1.msra.mxu0 %v371
    %1125 = vmatprep.subr.mxu0 0.0
    %1126 = vmatpush1.msra.mxu0 %v374
    %1127 = vmatprep.subr.mxu0 0.0
    %1128 = vmatpush1.msra.mxu0 %v377
    %1129 = vmatprep.subr.mxu0 0.0
    %1130 = vmatpush1.msra.mxu0 %v380
    %1131 = vmatprep.subr.mxu0 0.0
    %1132 = vmatpush1.msra.mxu0 %v383
    %1133 = vmatprep.subr.mxu0 0.0
    %1134 = vmatpush1.msra.mxu0 %v386
    %1135 = vmatprep.subr.mxu0 0.0
    %1136 = vmatpush1.msra.mxu0 %v389
    %1137 = vmatprep.subr.mxu0 0.0
    %1138 = vmatpush1.msra.mxu0 0.0
    %1139 = vmatprep.subr.mxu0 0.0
    %1140 = vmatpush1.msra.mxu0 0.0
    %1141 = vmatprep.subr.mxu0 0.0
    %1142 = vmatpush1.msra.mxu0 0.0
    %1143 = vmatprep.subr.mxu0 0.0
    %1144 = vmatpush1.msra.mxu0 0.0
    %1145 = vmatprep.subr.mxu0 0.0
    %1146 = vmatpush1.msra.mxu0 0.0
    %1147 = vmatprep.subr.mxu0 0.0
    %1148 = vmatpush1.msra.mxu0 0.0
    %1149 = vmatprep.subr.mxu0 0.0
    %1150 = vmatpush1.msra.mxu0 0.0
    %1151 = vmatprep.subr.mxu0 0.0
    %1152 = vmatpush1.msra.mxu0 0.0
    %1153 = vmatprep.subr.mxu0 0.0
    %1154 = vmatpush1.msra.mxu0 0.0
    %1155 = vmatprep.subr.mxu0 0.0
    %1156 = vmatpush1.msra.mxu0 0.0
    %1157 = vmatprep.subr.mxu0 0.0
    %1158 = vmatpush1.msra.mxu0 0.0
    %1159 = vmatprep.subr.mxu0 0.0
    %1160 = vmatpush1.msra.mxu0 0.0
    %1161 = vmatprep.subr.mxu0 0.0
    %1162 = vmatpush1.msra.mxu0 0.0
    %1163 = vmatprep.subr.mxu0 0.0
    %1164 = vmatpush1.msra.mxu0 0.0
    %1165 = vmatprep.subr.mxu0 0.0
    %1166 = vmatpush1.msra.mxu0 0.0
    %1167 = vmatprep.subr.mxu0 0.0
    %1168 = vmatpush1.msra.mxu0 0.0
    %1169 = vmatprep.mubr.f32.mxu0 0.0
    %1170 = vmatmul.mubr.f32.gmra.mrb[0].mxu0 %v1033
    %v1171 = vpop.f32.mrb[0].mxu0
    %v1172 = vadd.f32 0.0, %v1171
    %v1173 = vpop.f32.mrb[0].mxu0
    %1174 = vdwg.mxu0
    %v1175 = vadd.f32 %v215, %v1101
    %v1176 = vxor.u32 %v1175, 2147483648
    %v1177 = vmul.f32 %v1176, 1.442695
    %v1178 = vpow.pop %v1177
    %v1179 = vadd.f32 %v1178, 1.0
    %v1180 = vrcp.pop %v1179
    %v1181 = vmul.f32 1.0, %v1180
    %v1182 = vadd.f32 %v217, %v1103
    %v1183 = vxor.u32 %v1182, 2147483648
    %v1184 = vmul.f32 %v1183, 1.442695
    %v1185 = vpow.pop %v1184
    %v1186 = vadd.f32 %v1185, 1.0
    %v1187 = vrcp.pop %v1186
    %v1188 = vmul.f32 1.0, %v1187
    %v1189 = vadd.f32 %v1181, %v1172
    %v1190 = vadd.f32 %v324, %v1189
    %v1191 = vtanh.pop %v1190
    %v1192 = vsub.f32 %v1033, %v1191
    %v1193 = vmul.f32 %v1188, %v1192
    %v1194 = vadd.f32 %v1191, %v1193
    %1195 = vmatprep.subr.mxu0 %v343
    %1196 = vmatpush1.msra.mxu0 %v342
    %1197 = vmatprep.subr.mxu0 %v346
    %1198 = vmatpush1.msra.mxu0 %v345
    %1199 = vmatprep.subr.mxu0 %v349
    %1200 = vmatpush1.msra.mxu0 %v348
    %1201 = vmatprep.subr.mxu0 %v352
    %1202 = vmatpush1.msra.mxu0 %v351
    %1203 = vmatprep.subr.mxu0 %v355
    %1204 = vmatpush1.msra.mxu0 %v354
    %1205 = vmatprep.subr.mxu0 %v358
    %1206 = vmatpush1.msra.mxu0 %v357
    %1207 = vmatprep.subr.mxu0 %v361
    %1208 = vmatpush1.msra.mxu0 %v360
    %1209 = vmatprep.subr.mxu0 %v364
    %1210 = vmatpush1.msra.mxu0 %v363
    %1211 = vmatprep.subr.mxu0 %v367
    %1212 = vmatpush1.msra.mxu0 %v366
    %1213 = vmatprep.subr.mxu0 %v370
    %1214 = vmatpush1.msra.mxu0 %v369
    %1215 = vmatprep.subr.mxu0 %v373
    %1216 = vmatpush1.msra.mxu0 %v372
    %1217 = vmatprep.subr.mxu0 %v376
    %1218 = vmatpush1.msra.mxu0 %v375
    %1219 = vmatprep.subr.mxu0 %v379
    %1220 = vmatpush1.msra.mxu0 %v378
    %1221 = vmatprep.subr.mxu0 %v382
    %1222 = vmatpush1.msra.mxu0 %v381
    %1223 = vmatprep.subr.mxu0 %v385
    %1224 = vmatpush1.msra.mxu0 %v384
    %1225 = vmatprep.subr.mxu0 %v388
    %1226 = vmatpush1.msra.mxu0 %v387
    %1227 = vmatprep.subr.mxu0 0.0
    %1228 = vmatpush1.msra.mxu0 0.0
    %1229 = vmatprep.subr.mxu0 0.0
    %1230 = vmatpush1.msra.mxu0 0.0
    %1231 = vmatprep.subr.mxu0 0.0
    %1232 = vmatpush1.msra.mxu0 0.0
    %1233 = vmatprep.subr.mxu0 0.0
    %1234 = vmatpush1.msra.mxu0 0.0
    %1235 = vmatprep.subr.mxu0 0.0
    %1236 = vmatpush1.msra.mxu0 0.0
    %1237 = vmatprep.subr.mxu0 0.0
    %1238 = vmatpush1.msra.mxu0 0.0
    %1239 = vmatprep.subr.mxu0 0.0
    %1240 = vmatpush1.msra.mxu0 0.0
    %1241 = vmatprep.subr.mxu0 0.0
    %1242 = vmatpush1.msra.mxu0 0.0
    %1243 = vmatprep.subr.mxu0 0.0
    %1244 = vmatpush1.msra.mxu0 0.0
    %1245 = vmatprep.subr.mxu0 0.0
    %1246 = vmatpush1.msra.mxu0 0.0
    %1247 = vmatprep.subr.mxu0 0.0
    %1248 = vmatpush1.msra.mxu0 0.0
    %1249 = vmatprep.subr.mxu0 0.0
    %1250 = vmatpush1.msra.mxu0 0.0
    %1251 = vmatprep.subr.mxu0 0.0
    %1252 = vmatpush1.msra.mxu0 0.0
    %1253 = vmatprep.subr.mxu0 0.0
    %1254 = vmatpush1.msra.mxu0 0.0
    %1255 = vmatprep.subr.mxu0 0.0
    %1256 = vmatpush1.msra.mxu0 0.0
    %1257 = vmatprep.subr.mxu0 0.0
    %1258 = vmatpush1.msra.mxu0 0.0
    %1259 = vmatprep.mubr.f32.mxu0 0.0
    %1260 = vmatmul.mubr.f32.gmra.mrb[0].mxu0 %v1194
    %v1261 = vpop.f32.mrb[0].mxu0
    %v1262 = vadd.f32 0.0, %v1261
    %v1263 = vpop.f32.mrb[0].mxu0
    %v1264 = vadd.f32 0.0, %v1263
    %1265 = vdwg.mxu0
    %1266 = vmatprep.subr.mxu0 0.0
    %1267 = vmatpush1.msra.mxu0 %v344
    %1268 = vmatprep.subr.mxu0 0.0
    %1269 = vmatpush1.msra.mxu0 %v347
    %1270 = vmatprep.subr.mxu0 0.0
    %1271 = vmatpush1.msra.mxu0 %v350
    %1272 = vmatprep.subr.mxu0 0.0
    %1273 = vmatpush1.msra.mxu0 %v353
    %1274 = vmatprep.subr.mxu0 0.0
    %1275 = vmatpush1.msra.mxu0 %v356
    %1276 = vmatprep.subr.mxu0 0.0
    %1277 = vmatpush1.msra.mxu0 %v359
    %1278 = vmatprep.subr.mxu0 0.0
    %1279 = vmatpush1.msra.mxu0 %v362
    %1280 = vmatprep.subr.mxu0 0.0
    %1281 = vmatpush1.msra.mxu0 %v365
    %1282 = vmatprep.subr.mxu0 0.0
    %1283 = vmatpush1.msra.mxu0 %v368
    %1284 = vmatprep.subr.mxu0 0.0
    %1285 = vmatpush1.msra.mxu0 %v371
    %1286 = vmatprep.subr.mxu0 0.0
    %1287 = vmatpush1.msra.mxu0 %v374
    %1288 = vmatprep.subr.mxu0 0.0
    %1289 = vmatpush1.msra.mxu0 %v377
    %1290 = vmatprep.subr.mxu0 0.0
    %1291 = vmatpush1.msra.mxu0 %v380
    %1292 = vmatprep.subr.mxu0 0.0
    %1293 = vmatpush1.msra.mxu0 %v383
    %1294 = vmatprep.subr.mxu0 0.0
    %1295 = vmatpush1.msra.mxu0 %v386
    %1296 = vmatprep.subr.mxu0 0.0
    %1297 = vmatpush1.msra.mxu0 %v389
    %1298 = vmatprep.subr.mxu0 0.0
    %1299 = vmatpush1.msra.mxu0 0.0
    %1300 = vmatprep.subr.mxu0 0.0
    %1301 = vmatpush1.msra.mxu0 0.0
    %1302 = vmatprep.subr.mxu0 0.0
    %1303 = vmatpush1.msra.mxu0 0.0
    %1304 = vmatprep.subr.mxu0 0.0
    %1305 = vmatpush1.msra.mxu0 0.0
    %1306 = vmatprep.subr.mxu0 0.0
    %1307 = vmatpush1.msra.mxu0 0.0
    %1308 = vmatprep.subr.mxu0 0.0
    %1309 = vmatpush1.msra.mxu0 0.0
    %1310 = vmatprep.subr.mxu0 0.0
    %1311 = vmatpush1.msra.mxu0 0.0
    %1312 = vmatprep.subr.mxu0 0.0
    %1313 = vmatpush1.msra.mxu0 0.0
    %1314 = vmatprep.subr.mxu0 0.0
    %1315 = vmatpush1.msra.mxu0 0.0
    %1316 = vmatprep.subr.mxu0 0.0
    %1317 = vmatpush1.msra.mxu0 0.0
    %1318 = vmatprep.subr.mxu0 0.0
    %1319 = vmatpush1.msra.mxu0 0.0
    %1320 = vmatprep.subr.mxu0 0.0
    %1321 = vmatpush1.msra.mxu0 0.0
    %1322 = vmatprep.subr.mxu0 0.0
    %1323 = vmatpush1.msra.mxu0 0.0
    %1324 = vmatprep.subr.mxu0 0.0
    %1325 = vmatpush1.msra.mxu0 0.0
    %1326 = vmatprep.subr.mxu0 0.0
    %1327 = vmatpush1.msra.mxu0 0.0
    %1328 = vmatprep.subr.mxu0 0.0
    %1329 = vmatpush1.msra.mxu0 0.0
    %1330 = vmatprep.mubr.f32.mxu0 0.0
    %1331 = vmatmul.mubr.f32.gmra.mrb[0].mxu0 %v1194
    %v1332 = vpop.f32.mrb[0].mxu0
    %v1333 = vadd.f32 0.0, %v1332
    %v1334 = vpop.f32.mrb[0].mxu0
    %1335 = vdwg.mxu0
    %v1336 = vadd.f32 %v221, %v1262
    %v1337 = vxor.u32 %v1336, 2147483648
    %v1338 = vmul.f32 %v1337, 1.442695
    %v1339 = vpow.pop %v1338
    %v1340 = vadd.f32 %v1339, 1.0
    %v1341 = vrcp.pop %v1340
    %v1342 = vmul.f32 1.0, %v1341
    %v1343 = vadd.f32 %v223, %v1264
    %v1344 = vxor.u32 %v1343, 2147483648
    %v1345 = vmul.f32 %v1344, 1.442695
    %v1346 = vpow.pop %v1345
    %v1347 = vadd.f32 %v1346, 1.0
    %v1348 = vrcp.pop %v1347
    %v1349 = vmul.f32 1.0, %v1348
    %v1350 = vadd.f32 %v1342, %v1333
    %v1351 = vadd.f32 %v329, %v1350
    %v1352 = vtanh.pop %v1351
    %v1353 = vsub.f32 %v1194, %v1352
    %v1354 = vmul.f32 %v1349, %v1353
    %v1355 = vadd.f32 %v1352, %v1354
    %1356 = vmatprep.subr.mxu0 %v343
    %1357 = vmatpush1.msra.mxu0 %v342
    %1358 = vmatprep.subr.mxu0 %v346
    %1359 = vmatpush1.msra.mxu0 %v345
    %1360 = vmatprep.subr.mxu0 %v349
    %1361 = vmatpush1.msra.mxu0 %v348
    %1362 = vmatprep.subr.mxu0 %v352
    %1363 = vmatpush1.msra.mxu0 %v351
    %1364 = vmatprep.subr.mxu0 %v355
    %1365 = vmatpush1.msra.mxu0 %v354
    %1366 = vmatprep.subr.mxu0 %v358
    %1367 = vmatpush1.msra.mxu0 %v357
    %1368 = vmatprep.subr.mxu0 %v361
    %1369 = vmatpush1.msra.mxu0 %v360
    %1370 = vmatprep.subr.mxu0 %v364
    %1371 = vmatpush1.msra.mxu0 %v363
    %1372 = vmatprep.subr.mxu0 %v367
    %1373 = vmatpush1.msra.mxu0 %v366
    %1374 = vmatprep.subr.mxu0 %v370
    %1375 = vmatpush1.msra.mxu0 %v369
    %1376 = vmatprep.subr.mxu0 %v373
    %1377 = vmatpush1.msra.mxu0 %v372
    %1378 = vmatprep.subr.mxu0 %v376
    %1379 = vmatpush1.msra.mxu0 %v375
    %1380 = vmatprep.subr.mxu0 %v379
    %1381 = vmatpush1.msra.mxu0 %v378
    %1382 = vmatprep.subr.mxu0 %v382
    %1383 = vmatpush1.msra.mxu0 %v381
    %1384 = vmatprep.subr.mxu0 %v385
    %1385 = vmatpush1.msra.mxu0 %v384
    %1386 = vmatprep.subr.mxu0 %v388
    %1387 = vmatpush1.msra.mxu0 %v387
    %1388 = vmatprep.subr.mxu0 0.0
    %1389 = vmatpush1.msra.mxu0 0.0
    %1390 = vmatprep.subr.mxu0 0.0
    %1391 = vmatpush1.msra.mxu0 0.0
    %1392 = vmatprep.subr.mxu0 0.0
    %1393 = vmatpush1.msra.mxu0 0.0
    %1394 = vmatprep.subr.mxu0 0.0
    %1395 = vmatpush1.msra.mxu0 0.0
    %1396 = vmatprep.subr.mxu0 0.0
    %1397 = vmatpush1.msra.mxu0 0.0
    %1398 = vmatprep.subr.mxu0 0.0
    %1399 = vmatpush1.msra.mxu0 0.0
    %1400 = vmatprep.subr.mxu0 0.0
    %1401 = vmatpush1.msra.mxu0 0.0
    %1402 = vmatprep.subr.mxu0 0.0
    %1403 = vmatpush1.msra.mxu0 0.0
    %1404 = vmatprep.subr.mxu0 0.0
    %1405 = vmatpush1.msra.mxu0 0.0
    %1406 = vmatprep.subr.mxu0 0.0
    %1407 = vmatpush1.msra.mxu0 0.0
    %1408 = vmatprep.subr.mxu0 0.0
    %1409 = vmatpush1.msra.mxu0 0.0
    %1410 = vmatprep.subr.mxu0 0.0
    %1411 = vmatpush1.msra.mxu0 0.0
    %1412 = vmatprep.subr.mxu0 0.0
    %1413 = vmatpush1.msra.mxu0 0.0
    %1414 = vmatprep.subr.mxu0 0.0
    %1415 = vmatpush1.msra.mxu0 0.0
    %1416 = vmatprep.subr.mxu0 0.0
    %1417 = vmatpush1.msra.mxu0 0.0
    %1418 = vmatprep.subr.mxu0 0.0
    %1419 = vmatpush1.msra.mxu0 0.0
    %1420 = vmatprep.mubr.f32.mxu0 0.0
    %1421 = vmatmul.mubr.f32.gmra.mrb[0].mxu0 %v1355
    %v1422 = vpop.f32.mrb[0].mxu0
    %v1423 = vadd.f32 0.0, %v1422
    %v1424 = vpop.f32.mrb[0].mxu0
    %v1425 = vadd.f32 0.0, %v1424
    %1426 = vdwg.mxu0
    %1427 = vmatprep.subr.mxu0 0.0
    %1428 = vmatpush1.msra.mxu0 %v344
    %1429 = vmatprep.subr.mxu0 0.0
    %1430 = vmatpush1.msra.mxu0 %v347
    %1431 = vmatprep.subr.mxu0 0.0
    %1432 = vmatpush1.msra.mxu0 %v350
    %1433 = vmatprep.subr.mxu0 0.0
    %1434 = vmatpush1.msra.mxu0 %v353
    %1435 = vmatprep.subr.mxu0 0.0
    %1436 = vmatpush1.msra.mxu0 %v356
    %1437 = vmatprep.subr.mxu0 0.0
    %1438 = vmatpush1.msra.mxu0 %v359
    %1439 = vmatprep.subr.mxu0 0.0
    %1440 = vmatpush1.msra.mxu0 %v362
    %1441 = vmatprep.subr.mxu0 0.0
    %1442 = vmatpush1.msra.mxu0 %v365
    %1443 = vmatprep.subr.mxu0 0.0
    %1444 = vmatpush1.msra.mxu0 %v368
    %1445 = vmatprep.subr.mxu0 0.0
    %1446 = vmatpush1.msra.mxu0 %v371
    %1447 = vmatprep.subr.mxu0 0.0
    %1448 = vmatpush1.msra.mxu0 %v374
    %1449 = vmatprep.subr.mxu0 0.0
    %1450 = vmatpush1.msra.mxu0 %v377
    %1451 = vmatprep.subr.mxu0 0.0
    %1452 = vmatpush1.msra.mxu0 %v380
    %1453 = vmatprep.subr.mxu0 0.0
    %1454 = vmatpush1.msra.mxu0 %v383
    %1455 = vmatprep.subr.mxu0 0.0
    %1456 = vmatpush1.msra.mxu0 %v386
    %1457 = vmatprep.subr.mxu0 0.0
    %1458 = vmatpush1.msra.mxu0 %v389
    %1459 = vmatprep.subr.mxu0 0.0
    %1460 = vmatpush1.msra.mxu0 0.0
    %1461 = vmatprep.subr.mxu0 0.0
    %1462 = vmatpush1.msra.mxu0 0.0
    %1463 = vmatprep.subr.mxu0 0.0
    %1464 = vmatpush1.msra.mxu0 0.0
    %1465 = vmatprep.subr.mxu0 0.0
    %1466 = vmatpush1.msra.mxu0 0.0
    %1467 = vmatprep.subr.mxu0 0.0
    %1468 = vmatpush1.msra.mxu0 0.0
    %1469 = vmatprep.subr.mxu0 0.0
    %1470 = vmatpush1.msra.mxu0 0.0
    %1471 = vmatprep.subr.mxu0 0.0
    %1472 = vmatpush1.msra.mxu0 0.0
    %1473 = vmatprep.subr.mxu0 0.0
    %1474 = vmatpush1.msra.mxu0 0.0
    %1475 = vmatprep.subr.mxu0 0.0
    %1476 = vmatpush1.msra.mxu0 0.0
    %1477 = vmatprep.subr.mxu0 0.0
    %1478 = vmatpush1.msra.mxu0 0.0
    %1479 = vmatprep.subr.mxu0 0.0
    %1480 = vmatpush1.msra.mxu0 0.0
    %1481 = vmatprep.subr.mxu0 0.0
    %1482 = vmatpush1.msra.mxu0 0.0
    %1483 = vmatprep.subr.mxu0 0.0
    %1484 = vmatpush1.msra.mxu0 0.0
    %1485 = vmatprep.subr.mxu0 0.0
    %1486 = vmatpush1.msra.mxu0 0.0
    %1487 = vmatprep.subr.mxu0 0.0
    %1488 = vmatpush1.msra.mxu0 0.0
    %1489 = vmatprep.subr.mxu0 0.0
    %1490 = vmatpush1.msra.mxu0 0.0
    %1491 = vmatprep.mubr.f32.mxu0 0.0
    %1492 = vmatmul.mubr.f32.gmra.mrb[0].mxu0 %v1355
    %v1493 = vpop.f32.mrb[0].mxu0
    %v1494 = vadd.f32 0.0, %v1493
    %v1495 = vpop.f32.mrb[0].mxu0
    %1496 = vdwg.mxu0
    %v1497 = vadd.f32 %v227, %v1423
    %v1498 = vxor.u32 %v1497, 2147483648
    %v1499 = vmul.f32 %v1498, 1.442695
    %v1500 = vpow.pop %v1499
    %v1501 = vadd.f32 %v1500, 1.0
    %v1502 = vrcp.pop %v1501
    %v1503 = vmul.f32 1.0, %v1502
    %v1504 = vadd.f32 %v229, %v1425
    %v1505 = vxor.u32 %v1504, 2147483648
    %v1506 = vmul.f32 %v1505, 1.442695
    %v1507 = vpow.pop %v1506
    %v1508 = vadd.f32 %v1507, 1.0
    %v1509 = vrcp.pop %v1508
    %v1510 = vmul.f32 1.0, %v1509
    %v1511 = vadd.f32 %v1503, %v1494
    %v1512 = vadd.f32 %v334, %v1511
    %v1513 = vtanh.pop %v1512
    %v1514 = vsub.f32 %v1355, %v1513
    %v1515 = vmul.f32 %v1510, %v1514
    %v1516 = vadd.f32 %v1513, %v1515
    %1517 = vmatprep.subr.mxu0 %v343
    %1518 = vmatpush1.msra.mxu0 %v342
    %1519 = vmatprep.subr.mxu0 %v346
    %1520 = vmatpush1.msra.mxu0 %v345
    %1521 = vmatprep.subr.mxu0 %v349
    %1522 = vmatpush1.msra.mxu0 %v348
    %1523 = vmatprep.subr.mxu0 %v352
    %1524 = vmatpush1.msra.mxu0 %v351
    %1525 = vmatprep.subr.mxu0 %v355
    %1526 = vmatpush1.msra.mxu0 %v354
    %1527 = vmatprep.subr.mxu0 %v358
    %1528 = vmatpush1.msra.mxu0 %v357
    %1529 = vmatprep.subr.mxu0 %v361
    %1530 = vmatpush1.msra.mxu0 %v360
    %1531 = vmatprep.subr.mxu0 %v364
    %1532 = vmatpush1.msra.mxu0 %v363
    %1533 = vmatprep.subr.mxu0 %v367
    %1534 = vmatpush1.msra.mxu0 %v366
    %1535 = vmatprep.subr.mxu0 %v370
    %1536 = vmatpush1.msra.mxu0 %v369
    %1537 = vmatprep.subr.mxu0 %v373
    %1538 = vmatpush1.msra.mxu0 %v372
    %1539 = vmatprep.subr.mxu0 %v376
    %1540 = vmatpush1.msra.mxu0 %v375
    %1541 = vmatprep.subr.mxu0 %v379
    %1542 = vmatpush1.msra.mxu0 %v378
    %1543 = vmatprep.subr.mxu0 %v382
    %1544 = vmatpush1.msra.mxu0 %v381
    %1545 = vmatprep.subr.mxu0 %v385
    %1546 = vmatpush1.msra.mxu0 %v384
    %1547 = vmatprep.subr.mxu0 %v388
    %1548 = vmatpush1.msra.mxu0 %v387
    %1549 = vmatprep.subr.mxu0 0.0
    %1550 = vmatpush1.msra.mxu0 0.0
    %1551 = vmatprep.subr.mxu0 0.0
    %1552 = vmatpush1.msra.mxu0 0.0
    %1553 = vmatprep.subr.mxu0 0.0
    %1554 = vmatpush1.msra.mxu0 0.0
    %1555 = vmatprep.subr.mxu0 0.0
    %1556 = vmatpush1.msra.mxu0 0.0
    %1557 = vmatprep.subr.mxu0 0.0
    %1558 = vmatpush1.msra.mxu0 0.0
    %1559 = vmatprep.subr.mxu0 0.0
    %1560 = vmatpush1.msra.mxu0 0.0
    %1561 = vmatprep.subr.mxu0 0.0
    %1562 = vmatpush1.msra.mxu0 0.0
    %1563 = vmatprep.subr.mxu0 0.0
    %1564 = vmatpush1.msra.mxu0 0.0
    %1565 = vmatprep.subr.mxu0 0.0
    %1566 = vmatpush1.msra.mxu0 0.0
    %1567 = vmatprep.subr.mxu0 0.0
    %1568 = vmatpush1.msra.mxu0 0.0
    %1569 = vmatprep.subr.mxu0 0.0
    %1570 = vmatpush1.msra.mxu0 0.0
    %1571 = vmatprep.subr.mxu0 0.0
    %1572 = vmatpush1.msra.mxu0 0.0
    %1573 = vmatprep.subr.mxu0 0.0
    %1574 = vmatpush1.msra.mxu0 0.0
    %1575 = vmatprep.subr.mxu0 0.0
    %1576 = vmatpush1.msra.mxu0 0.0
    %1577 = vmatprep.subr.mxu0 0.0
    %1578 = vmatpush1.msra.mxu0 0.0
    %1579 = vmatprep.subr.mxu0 0.0
    %1580 = vmatpush1.msra.mxu0 0.0
    %1581 = vmatprep.mubr.f32.mxu0 0.0
    %1582 = vmatmul.mubr.f32.gmra.mrb[0].mxu0 %v1516
    %v1583 = vpop.f32.mrb[0].mxu0
    %v1584 = vadd.f32 0.0, %v1583
    %v1585 = vpop.f32.mrb[0].mxu0
    %v1586 = vadd.f32 0.0, %v1585
    %1587 = vdwg.mxu0
    %1588 = vmatprep.subr.mxu0 0.0
    %1589 = vmatpush1.msra.mxu0 %v344
    %1590 = vmatprep.subr.mxu0 0.0
    %1591 = vmatpush1.msra.mxu0 %v347
    %1592 = vmatprep.subr.mxu0 0.0
    %1593 = vmatpush1.msra.mxu0 %v350
    %1594 = vmatprep.subr.mxu0 0.0
    %1595 = vmatpush1.msra.mxu0 %v353
    %1596 = vmatprep.subr.mxu0 0.0
    %1597 = vmatpush1.msra.mxu0 %v356
    %1598 = vmatprep.subr.mxu0 0.0
    %1599 = vmatpush1.msra.mxu0 %v359
    %1600 = vmatprep.subr.mxu0 0.0
    %1601 = vmatpush1.msra.mxu0 %v362
    %1602 = vmatprep.subr.mxu0 0.0
    %1603 = vmatpush1.msra.mxu0 %v365
    %1604 = vmatprep.subr.mxu0 0.0
    %1605 = vmatpush1.msra.mxu0 %v368
    %1606 = vmatprep.subr.mxu0 0.0
    %1607 = vmatpush1.msra.mxu0 %v371
    %1608 = vmatprep.subr.mxu0 0.0
    %1609 = vmatpush1.msra.mxu0 %v374
    %1610 = vmatprep.subr.mxu0 0.0
    %1611 = vmatpush1.msra.mxu0 %v377
    %1612 = vmatprep.subr.mxu0 0.0
    %1613 = vmatpush1.msra.mxu0 %v380
    %1614 = vmatprep.subr.mxu0 0.0
    %1615 = vmatpush1.msra.mxu0 %v383
    %1616 = vmatprep.subr.mxu0 0.0
    %1617 = vmatpush1.msra.mxu0 %v386
    %1618 = vmatprep.subr.mxu0 0.0
    %1619 = vmatpush1.msra.mxu0 %v389
    %1620 = vmatprep.subr.mxu0 0.0
    %1621 = vmatpush1.msra.mxu0 0.0
    %1622 = vmatprep.subr.mxu0 0.0
    %1623 = vmatpush1.msra.mxu0 0.0
    %1624 = vmatprep.subr.mxu0 0.0
    %1625 = vmatpush1.msra.mxu0 0.0
    %1626 = vmatprep.subr.mxu0 0.0
    %1627 = vmatpush1.msra.mxu0 0.0
    %1628 = vmatprep.subr.mxu0 0.0
    %1629 = vmatpush1.msra.mxu0 0.0
    %1630 = vmatprep.subr.mxu0 0.0
    %1631 = vmatpush1.msra.mxu0 0.0
    %1632 = vmatprep.subr.mxu0 0.0
    %1633 = vmatpush1.msra.mxu0 0.0
    %1634 = vmatprep.subr.mxu0 0.0
    %1635 = vmatpush1.msra.mxu0 0.0
    %1636 = vmatprep.subr.mxu0 0.0
    %1637 = vmatpush1.msra.mxu0 0.0
    %1638 = vmatprep.subr.mxu0 0.0
    %1639 = vmatpush1.msra.mxu0 0.0
    %1640 = vmatprep.subr.mxu0 0.0
    %1641 = vmatpush1.msra.mxu0 0.0
    %1642 = vmatprep.subr.mxu0 0.0
    %1643 = vmatpush1.msra.mxu0 0.0
    %1644 = vmatprep.subr.mxu0 0.0
    %1645 = vmatpush1.msra.mxu0 0.0
    %1646 = vmatprep.subr.mxu0 0.0
    %1647 = vmatpush1.msra.mxu0 0.0
    %1648 = vmatprep.subr.mxu0 0.0
    %1649 = vmatpush1.msra.mxu0 0.0
    %1650 = vmatprep.subr.mxu0 0.0
    %1651 = vmatpush1.msra.mxu0 0.0
    %1652 = vmatprep.mubr.f32.mxu0 0.0
    %1653 = vmatmul.mubr.f32.gmra.mrb[0].mxu0 %v1516
    %v1654 = vpop.f32.mrb[0].mxu0
    %v1655 = vadd.f32 0.0, %v1654
    %v1656 = vpop.f32.mrb[0].mxu0
    %1657 = vdwg.mxu0
    %v1658 = vadd.f32 %v233, %v1584
    %v1659 = vxor.u32 %v1658, 2147483648
    %v1660 = vmul.f32 %v1659, 1.442695
    %v1661 = vpow.pop %v1660
    %v1662 = vadd.f32 %v1661, 1.0
    %v1663 = vrcp.pop %v1662
    %v1664 = vmul.f32 1.0, %v1663
    %v1665 = vadd.f32 %v235, %v1586
    %v1666 = vxor.u32 %v1665, 2147483648
    %v1667 = vmul.f32 %v1666, 1.442695
    %v1668 = vpow.pop %v1667
    %v1669 = vadd.f32 %v1668, 1.0
    %v1670 = vrcp.pop %v1669
    %v1671 = vmul.f32 1.0, %v1670
    %v1672 = vadd.f32 %v1664, %v1655
    %v1673 = vadd.f32 %v339, %v1672
    %v1674 = vtanh.pop %v1673
    %v1675 = vsub.f32 %v1516, %v1674
    %v1676 = vmul.f32 %v1671, %v1675
    %v1677 = vadd.f32 %v1674, %v1676
    %v1678 = vld [vmem:[#allocation5] sm:$0xff]
    %v1679 = vld [vmem:[#allocation5 + $0x8] sm:$0xff]
    %v1680 = vld [vmem:[#allocation5 + $0x10] sm:$0xff]
    %v1681 = vld [vmem:[#allocation5 + $0x18] sm:$0xff]
    %v1682 = vld [vmem:[#allocation5 + $0x20] sm:$0xff]
    %v1683 = vld [vmem:[#allocation5 + $0x28] sm:$0xff]
    %v1684 = vld [vmem:[#allocation5 + $0x30] sm:$0xff]
    %v1685 = vld [vmem:[#allocation5 + $0x38] sm:$0xff]
    %v1686 = vld [vmem:[#allocation5 + $0x40] sm:$0xff]
    %v1687 = vld [vmem:[#allocation5 + $0x48] sm:$0xff]
    %v1688 = vld [vmem:[#allocation5 + $0x50] sm:$0xff]
    %v1689 = vld [vmem:[#allocation5 + $0x58] sm:$0xff]
    %v1690 = vld [vmem:[#allocation5 + $0x60] sm:$0xff]
    %v1691 = vld [vmem:[#allocation5 + $0x68] sm:$0xff]
    %v1692 = vld [vmem:[#allocation5 + $0x70] sm:$0xff]
    %v1693 = vld [vmem:[#allocation5 + $0x78] sm:$0xff]
    %v1694 = vld [vmem:[%s5] sm:$0x1]
    %v1696 = vlaneseq
    %v1697 = vshrl.u32 %v1696, 7
    %v1698 = vsub.s32 0, %v1697
    %v1699 = vrot.slane %v1694, %v1698
    %1701 = vmatprep.subr.mxu0 0.0
    %1702 = vmatpush1.msra.mxu0 %v1678
    %1703 = vmatprep.subr.mxu0 0.0
    %1704 = vmatpush1.msra.mxu0 %v1679
    %1705 = vmatprep.subr.mxu0 0.0
    %1706 = vmatpush1.msra.mxu0 %v1680
    %1707 = vmatprep.subr.mxu0 0.0
    %1708 = vmatpush1.msra.mxu0 %v1681
    %1709 = vmatprep.subr.mxu0 0.0
    %1710 = vmatpush1.msra.mxu0 %v1682
    %1711 = vmatprep.subr.mxu0 0.0
    %1712 = vmatpush1.msra.mxu0 %v1683
    %1713 = vmatprep.subr.mxu0 0.0
    %1714 = vmatpush1.msra.mxu0 %v1684
    %1715 = vmatprep.subr.mxu0 0.0
    %1716 = vmatpush1.msra.mxu0 %v1685
    %1717 = vmatprep.subr.mxu0 0.0
    %1718 = vmatpush1.msra.mxu0 %v1686
    %1719 = vmatprep.subr.mxu0 0.0
    %1720 = vmatpush1.msra.mxu0 %v1687
    %1721 = vmatprep.subr.mxu0 0.0
    %1722 = vmatpush1.msra.mxu0 %v1688
    %1723 = vmatprep.subr.mxu0 0.0
    %1724 = vmatpush1.msra.mxu0 %v1689
    %1725 = vmatprep.subr.mxu0 0.0
    %1726 = vmatpush1.msra.mxu0 %v1690
    %1727 = vmatprep.subr.mxu0 0.0
    %1728 = vmatpush1.msra.mxu0 %v1691
    %1729 = vmatprep.subr.mxu0 0.0
    %1730 = vmatpush1.msra.mxu0 %v1692
    %1731 = vmatprep.subr.mxu0 0.0
    %1732 = vmatpush1.msra.mxu0 %v1693
    %1733 = vmatprep.subr.mxu0 0.0
    %1734 = vmatpush1.msra.mxu0 0.0
    %1735 = vmatprep.subr.mxu0 0.0
    %1736 = vmatpush1.msra.mxu0 0.0
    %1737 = vmatprep.subr.mxu0 0.0
    %1738 = vmatpush1.msra.mxu0 0.0
    %1739 = vmatprep.subr.mxu0 0.0
    %1740 = vmatpush1.msra.mxu0 0.0
    %1741 = vmatprep.subr.mxu0 0.0
    %1742 = vmatpush1.msra.mxu0 0.0
    %1743 = vmatprep.subr.mxu0 0.0
    %1744 = vmatpush1.msra.mxu0 0.0
    %1745 = vmatprep.subr.mxu0 0.0
    %1746 = vmatpush1.msra.mxu0 0.0
    %1747 = vmatprep.subr.mxu0 0.0
    %1748 = vmatpush1.msra.mxu0 0.0
    %1749 = vmatprep.subr.mxu0 0.0
    %1750 = vmatpush1.msra.mxu0 0.0
    %1751 = vmatprep.subr.mxu0 0.0
    %1752 = vmatpush1.msra.mxu0 0.0
    %1753 = vmatprep.subr.mxu0 0.0
    %1754 = vmatpush1.msra.mxu0 0.0
    %1755 = vmatprep.subr.mxu0 0.0
    %1756 = vmatpush1.msra.mxu0 0.0
    %1757 = vmatprep.subr.mxu0 0.0
    %1758 = vmatpush1.msra.mxu0 0.0
    %1759 = vmatprep.subr.mxu0 0.0
    %1760 = vmatpush1.msra.mxu0 0.0
    %1761 = vmatprep.subr.mxu0 0.0
    %1762 = vmatpush1.msra.mxu0 0.0
    %1763 = vmatprep.subr.mxu0 0.0
    %1764 = vmatpush1.msra.mxu0 0.0
    %1765 = vmatprep.mubr.f32.mxu0 0.0
    %1766 = vmatmul.mubr.f32.gmra.mrb[0].mxu0 %v1677
    %v1767 = vpop.f32.mrb[0].mxu0
    %v1768 = vadd.f32 %v1699, %v1767
    %v1769 = vpop.f32.mrb[0].mxu0
    %1770 = vdwg.mxu0
    %1771 = vst [vmem:[#allocation7] sm:$0xff] %v1768
    // Predicated region
    $region34: #{tpu_custom_call.1} parent=1 // pred_check
      _
    $region35: #{tpu_custom_call.1} parent=1 // pred_check_branch
      %1773 = sbr.rel (0) target = $region37
    $region36: #{tpu_custom_call.1} parent=1 // pred_region
      %s1775 = ssub.s32 128, 128
      %1776 = vsyncadd [#allocation4], %s1775
      %s1778 = sshll.u32 [#allocation7], 4
      %s1779 = int_to_ptr.vmem [resolvable:$true] %s1778
      %1781 = dma.vmem_to_hbm [thread:$0]  %s1779, 128, %s6, [#allocation4]
    $region37: #{tpu_custom_call.1} parent=1 // pred_fallthru
      _
    // Predicated region
    $region38: #{tpu_custom_call.1} parent=1 // pred_check
      _
    $region39: #{tpu_custom_call.1} parent=1 // pred_check_branch
      %1783 = sbr.rel (0) target = $region41
    $region40: #{tpu_custom_call.1} parent=1 // pred_region
      %1784 = dma.done [#allocation4], 128
    $region41: #{tpu_custom_call.1} parent=1 // pred_fallthru
      _
    %1785 = vsyncpa [#allocation3], 1
    %1786 = vsyncpa [#allocation6], 1
    %1787 = vsyncpa [#allocation4], 1

</llo_original>
